<compile_context>
chip_gen: v6e
topology: v6e:2x2x1
jax: 0.10.0
libtpu: 0.0.40
codegen_flags: <defaults>
</compile_context>

<pallas_src>
import jax
import jax.numpy as jnp
from jax.experimental import pallas as pl
from jax.experimental.pallas import tpu as pltpu


_INV_SQRT2 = 0.7071067811865476


def _gelu_exact(x):
    # torch nn.GELU() default: exact erf formulation (multiply instead of divide).
    return 0.5 * x * (1.0 + jax.lax.erf(x * _INV_SQRT2))


def _round_up(n, m):
    return ((n + m - 1) // m) * m


def dino_mlp_kernel(x_ref, w1_ref, b1_ref, w2_ref, b2_ref, w3_ref, b3_ref,
                    o_ref, acc_ref):
    """Fused 3-layer MLP.  Grid axis 0 = batch tiles, axis 1 = hidden chunks."""
    k = pl.program_id(1)

    @pl.when(k == 0)
    def _():
        acc_ref[...] = jnp.zeros_like(acc_ref)

    # Layer 1 (this chunk of hidden columns): Linear + GELU, f32 accumulation.
    h1 = jnp.dot(x_ref[...], w1_ref[...], preferred_element_type=jnp.float32)
    h1 = _gelu_exact(h1 + b1_ref[...])

    # Layer 2 partial product: this hidden chunk's contribution to h2.
    acc_ref[...] += jnp.dot(h1.astype(w2_ref.dtype), w2_ref[...],
                            preferred_element_type=jnp.float32)

    @pl.when(k == pl.num_programs(1) - 1)
    def _():
        # Finalize: GELU, bottleneck projection, bias, store.
        h2 = _gelu_exact(acc_ref[...] + b2_ref[...])
        h3 = jnp.dot(h2.astype(w3_ref.dtype), w3_ref[...],
                     preferred_element_type=jnp.float32)
        o_ref[...] = (h3 + b3_ref[...]).astype(o_ref.dtype)


def _pick_hidden_tile(in_dim, hidden, bottleneck, itemsize, budget_bytes=24 << 20):
    """Largest lane-dense hidden chunk whose streamed weights fit a VMEM budget."""
    def resident(tk):
        return itemsize * (in_dim * tk + tk * hidden + hidden * bottleneck)

    if hidden % 128 != 0:
        return hidden  # cannot split cleanly; keep fully resident
    tk = hidden
    while tk > 128 and resident(tk) > budget_bytes:
        half = tk // 2
        if half % 128 != 0 or hidden % half != 0:
            break
        tk = half
    return tk


def _vmem_limit_bytes(tb, in_dim, hidden, bottleneck, tk, itemsize,
                      stream_bufs, const_bufs):
    streamed = itemsize * (in_dim * tk + tk * hidden) * stream_bufs   # w1/w2 chunks
    stream_bias = 4 * tk * stream_bufs                                # b1 chunk
    const_w = itemsize * hidden * bottleneck * const_bufs             # w3
    const_b = 4 * (hidden + bottleneck) * const_bufs                  # b2, b3
    x_tiles = 2 * tb * in_dim * itemsize                              # x (double-buffered)
    out_tiles = 2 * tb * bottleneck * 4                               # out (double-buffered)
    acc = tb * hidden * 4                                             # f32 accumulator scratch
    acts = 2 * tb * max(tk, hidden) * 4                               # f32 intermediates headroom
    est = streamed + stream_bias + const_w + const_b + x_tiles + out_tiles + acc + acts
    est += est // 4                                                   # ~25% headroom
    return int(min(max(est, 32 << 20), 100 << 20))


def dino_head_forward(x, params, *, batch_tile=256, compute_dtype=jnp.bfloat16):
    """DINOHead MLP forward pass as a single fused Pallas TPU kernel.

    x: (B, in_dim)
    params: (w1, b1, w2, b2, w3, b3); weights in (in, out) layout (transposed vs
            torch) and biases as (1, out) rows.  Weights are cast to bf16 for the
            MXU; accumulation stays f32.
    """
    w1, b1, w2, b2, w3, b3 = params
    B, in_dim = x.shape
    hidden = w1.shape[1]
    bottleneck = w3.shape[1]
    itemsize = jnp.dtype(compute_dtype).itemsize

    # Cast MXU operands once outside the kernel; biases stay f32.
    w1c, w2c, w3c = (w.astype(compute_dtype) for w in (w1, w2, w3))
    xc = x.astype(compute_dtype)

    # Batch tile: large (multiple of 256 matches v6e/v7x MXU M dim) unless the
    # batch is small, in which case one tile rounded up to a sublane multiple.
    tb = min(batch_tile, _round_up(B, 8))
    b_pad = _round_up(B, tb)
    if b_pad != B:
        xc = jnp.pad(xc, ((0, b_pad - B), (0, 0)))

    # Hidden chunking: stream w1 columns / w2 rows if resident weights would
    # blow past the VMEM budget (e.g. full DINO hidden=4096 on v7x).
    tk = _pick_hidden_tile(in_dim, hidden, bottleneck, itemsize)
    nk = hidden // tk

    grid = (b_pad // tb, nk)
    out_shape = jax.ShapeDtypeStruct((b_pad, bottleneck), x.dtype)

    def build(single_buffer_consts):
        if single_buffer_consts:
            const_spec = lambda shape: pl.BlockSpec(
                shape, lambda i, k: (0, 0), pipeline_mode=pl.Buffered(1))
        else:
            const_spec = lambda shape: pl.BlockSpec(shape, lambda i, k: (0, 0))
        const_bufs = 1 if single_buffer_consts else 2

        if nk == 1:
            # Whole hidden dim resident: every weight/bias block has a constant index.
            w1_spec = const_spec((in_dim, tk))
            b1_spec = const_spec((1, tk))
            w2_spec = const_spec((tk, hidden))
            stream_bufs = const_bufs
        else:
            # Streamed per hidden chunk (double-buffered to pipeline the DMA).
            w1_spec = pl.BlockSpec((in_dim, tk), lambda i, k: (0, k))
            b1_spec = pl.BlockSpec((1, tk), lambda i, k: (0, k))
            w2_spec = pl.BlockSpec((tk, hidden), lambda i, k: (k, 0))
            stream_bufs = 2

        return pl.pallas_call(
            dino_mlp_kernel,
            out_shape=out_shape,
            grid_spec=pltpu.PrefetchScalarGridSpec(
                num_scalar_prefetch=0,
                grid=grid,
                in_specs=[
                    pl.BlockSpec((tb, in_dim), lambda i, k: (i, 0)),  # x tile
                    w1_spec,                                          # w1 (chunked)
                    b1_spec,                                          # b1 (chunked)
                    w2_spec,                                          # w2 (chunked)
                    const_spec((1, hidden)),                          # b2
                    const_spec((hidden, bottleneck)),                 # w3
                    const_spec((1, bottleneck)),                      # b3
                ],
                out_specs=pl.BlockSpec((tb, bottleneck), lambda i, k: (i, 0)),
                scratch_shapes=[pltpu.VMEM((tb, hidden), jnp.float32)],
            ),
            compiler_params=pltpu.CompilerParams(
                dimension_semantics=("parallel", "arbitrary"),
                vmem_limit_bytes=_vmem_limit_bytes(
                    tb, in_dim, hidden, bottleneck, tk, itemsize,
                    stream_bufs, const_bufs),
            ),
        )

    args = (xc, w1c, b1, w2c, b2, w3c, b3)
    try:
        out = build(single_buffer_consts=hasattr(pl, "Buffered"))(*args)
    except Exception:
        # Fallback: default double-buffered constant blocks (still correct).
        out = build(single_buffer_consts=False)(*args)

    return out[:B] if b_pad != B else out


def init_dino_head_params(key, in_dim, hidden_dim, bottleneck_dim, dtype=jnp.float32):
    """Deterministic synthetic parameters (shapes match the nn.Linear layers of DINOHead.mlp)."""
    ks = jax.random.split(key, 6)

    def uniform_linear(kw, kb, fan_in, fan_out):
        bound = 1.0 / jnp.sqrt(jnp.asarray(fan_in, jnp.float32))
        w = jax.random.uniform(kw, (fan_in, fan_out), dtype, -bound, bound)
        b = jax.random.uniform(kb, (1, fan_out), dtype, -bound, bound)
        return w, b

    w1, b1 = uniform_linear(ks[0], ks[1], in_dim, hidden_dim)
    w2, b2 = uniform_linear(ks[2], ks[3], hidden_dim, hidden_dim)
    w3, b3 = uniform_linear(ks[4], ks[5], hidden_dim, bottleneck_dim)
    return (w1, b1, w2, b2, w3, b3)


def dino_head_reference(x, params, compute_dtype=jnp.bfloat16):
    """Pure-JAX reference mirroring the kernel's bf16-operand / f32-accumulate math."""
    w1, b1, w2, b2, w3, b3 = params
    c = compute_dtype
    h = jnp.dot(x.astype(c), w1.astype(c), preferred_element_type=jnp.float32) + b1
    h = _gelu_exact(h)
    h = jnp.dot(h.astype(c), w2.astype(c), preferred_element_type=jnp.float32) + b2
    h = _gelu_exact(h)
    return jnp.dot(h.astype(c), w3.astype(c), preferred_element_type=jnp.float32) + b3


if __name__ == "__main__":
    # Small shapes consistent with the module (in -> hidden -> hidden -> bottleneck),
    # lane-dense dims (multiples of 128) and a batch that is not a multiple of 8
    # to exercise the padding path.
    B, IN_DIM, HIDDEN, BOTTLENECK = 20, 128, 256, 128

    key = jax.random.PRNGKey(0)
    kx, kp = jax.random.split(key)
    x = jax.random.normal(kx, (B, IN_DIM), jnp.float32)
    params = init_dino_head_params(kp, IN_DIM, HIDDEN, BOTTLENECK)

    out = dino_head_forward(x, params)
    out = jax.block_until_ready(out)

    ref = dino_head_reference(x, params)
    assert out.shape == (B, BOTTLENECK), out.shape
    max_err = float(jnp.max(jnp.abs(out - ref)))
    assert jnp.allclose(out, ref, atol=2e-3, rtol=2e-3), max_err

    print("KERNEL_OK")
</pallas_src>

<mosaic_0001>
module attributes {stable_mosaic.version = 11 : i64} {
  func.func @dino_mlp_kernel(%arg0: i32, %arg1: i32, %arg2: memref<24x128xbf16, #tpu.memory_space<vmem>>, %arg3: memref<128x256xbf16, #tpu.memory_space<vmem>>, %arg4: memref<1x256xf32, #tpu.memory_space<vmem>>, %arg5: memref<256x256xbf16, #tpu.memory_space<vmem>>, %arg6: memref<1x256xf32, #tpu.memory_space<vmem>>, %arg7: memref<256x128xbf16, #tpu.memory_space<vmem>>, %arg8: memref<1x128xf32, #tpu.memory_space<vmem>>, %arg9: memref<24x128xf32, #tpu.memory_space<vmem>>, %arg10: memref<24x256xf32, #tpu.memory_space<vmem>>) attributes {dimension_semantics = [#tpu.dimension_semantics<parallel>, #tpu.dimension_semantics<arbitrary>], iteration_bounds = array<i64: 1, 1>, scalar_prefetch = 0 : i64, scratch_operands = 1 : i64, tpu.core_type = #tpu.core_type<tc>, window_params = [{transform_indices = @transform_0, window_bounds = array<i64: 24, 128>}, {pipeline_mode = #tpu.pipeline_mode<synchronous>, transform_indices = @transform_1, window_bounds = array<i64: 128, 256>}, {pipeline_mode = #tpu.pipeline_mode<synchronous>, transform_indices = @transform_2, window_bounds = array<i64: 1, 256>}, {pipeline_mode = #tpu.pipeline_mode<synchronous>, transform_indices = @transform_3, window_bounds = array<i64: 256, 256>}, {pipeline_mode = #tpu.pipeline_mode<synchronous>, transform_indices = @transform_4, window_bounds = array<i64: 1, 256>}, {pipeline_mode = #tpu.pipeline_mode<synchronous>, transform_indices = @transform_5, window_bounds = array<i64: 256, 128>}, {pipeline_mode = #tpu.pipeline_mode<synchronous>, transform_indices = @transform_6, window_bounds = array<i64: 1, 128>}, {transform_indices = @transform_7, window_bounds = array<i64: 24, 128>}]} {
    %c0_i32 = arith.constant 0 : i32
    %0 = arith.cmpi eq, %arg1, %c0_i32 : i32
    %1 = arith.extui %0 : i1 to i32
    %c0_i32_0 = arith.constant 0 : i32
    %2 = arith.cmpi ne, %1, %c0_i32_0 : i32
    scf.if %2 {
      %cst_18 = arith.constant 0.000000e+00 : f32
      %26 = vector.broadcast %cst_18 : f32 to vector<24x256xf32>
      %c0_19 = arith.constant 0 : index
      %c0_20 = arith.constant 0 : index
      %27 = vector.load %arg10[%c0_19, %c0_20] : memref<24x256xf32, #tpu.memory_space<vmem>>, vector<24x256xf32>
      tpu.vector_store %arg10[%c0_19, %c0_20], %26 {strides = array<i32>} : memref<24x256xf32, #tpu.memory_space<vmem>>, vector<24x256xf32>,
    } else {
    }
    %c0 = arith.constant 0 : index
    %c0_1 = arith.constant 0 : index
    %3 = vector.load %arg2[%c0, %c0_1] : memref<24x128xbf16, #tpu.memory_space<vmem>>, vector<24x128xbf16>
    %c0_2 = arith.constant 0 : index
    %c0_3 = arith.constant 0 : index
    %4 = vector.load %arg3[%c0_2, %c0_3] : memref<128x256xbf16, #tpu.memory_space<vmem>>, vector<128x256xbf16>
    %cst = arith.constant dense<0.000000e+00> : vector<24x256xf32>
    %5 = tpu.matmul %3, %4, %cst {dimension_numbers = #tpu.dot_dimension_numbers<[1], [0], [0], [1], [0, 0, 1, 1], [], []>} : vector<24x128xbf16>, vector<128x256xbf16>, vector<24x256xf32> -> vector<24x256xf32>
    %c0_4 = arith.constant 0 : index
    %c0_5 = arith.constant 0 : index
    %6 = vector.load %arg4[%c0_4, %c0_5] : memref<1x256xf32, #tpu.memory_space<vmem>>, vector<1x256xf32>
    %7 = vector.broadcast %6 : vector<1x256xf32> to vector<24x256xf32>
    %8 = arith.addf %5, %7 : vector<24x256xf32>
    %cst_6 = arith.constant 5.000000e-01 : f32
    %9 = vector.broadcast %cst_6 : f32 to vector<24x256xf32>
    %10 = arith.mulf %9, %8 : vector<24x256xf32>
    %cst_7 = arith.constant 0.707106769 : f32
    %11 = vector.broadcast %cst_7 : f32 to vector<24x256xf32>
    %12 = arith.mulf %8, %11 : vector<24x256xf32>
    %13 = math.erf %12 : vector<24x256xf32>
    %cst_8 = arith.constant 1.000000e+00 : f32
    %14 = vector.broadcast %cst_8 : f32 to vector<24x256xf32>
    %15 = arith.addf %14, %13 : vector<24x256xf32>
    %16 = arith.mulf %10, %15 : vector<24x256xf32>
    %c0_9 = arith.constant 0 : index
    %c0_10 = arith.constant 0 : index
    %17 = vector.load %arg10[%c0_9, %c0_10] : memref<24x256xf32, #tpu.memory_space<vmem>>, vector<24x256xf32>
    %18 = arith.truncf %16 : vector<24x256xf32> to vector<24x256xbf16>
    %c0_11 = arith.constant 0 : index
    %c0_12 = arith.constant 0 : index
    %19 = vector.load %arg5[%c0_11, %c0_12] : memref<256x256xbf16, #tpu.memory_space<vmem>>, vector<256x256xbf16>
    %cst_13 = arith.constant dense<0.000000e+00> : vector<24x256xf32>
    %20 = tpu.matmul %18, %19, %cst_13 {dimension_numbers = #tpu.dot_dimension_numbers<[1], [0], [0], [1], [0, 0, 1, 1], [], []>} : vector<24x256xbf16>, vector<256x256xbf16>, vector<24x256xf32> -> vector<24x256xf32>
    %21 = arith.addf %17, %20 : vector<24x256xf32>
    %c0_14 = arith.constant 0 : index
    %c0_15 = arith.constant 0 : index
    %22 = vector.load %arg10[%c0_14, %c0_15] : memref<24x256xf32, #tpu.memory_space<vmem>>, vector<24x256xf32>
    tpu.vector_store %arg10[%c0_14, %c0_15], %21 {strides = array<i32>} : memref<24x256xf32, #tpu.memory_space<vmem>>, vector<24x256xf32>,
    %c0_i32_16 = arith.constant 0 : i32
    %23 = arith.cmpi eq, %arg1, %c0_i32_16 : i32
    %24 = arith.extui %23 : i1 to i32
    %c0_i32_17 = arith.constant 0 : i32
    %25 = arith.cmpi ne, %24, %c0_i32_17 : i32
    scf.if %25 {
      %c0_18 = arith.constant 0 : index
      %c0_19 = arith.constant 0 : index
      %26 = vector.load %arg10[%c0_18, %c0_19] : memref<24x256xf32, #tpu.memory_space<vmem>>, vector<24x256xf32>
      %c0_20 = arith.constant 0 : index
      %c0_21 = arith.constant 0 : index
      %27 = vector.load %arg6[%c0_20, %c0_21] : memref<1x256xf32, #tpu.memory_space<vmem>>, vector<1x256xf32>
      %28 = vector.broadcast %27 : vector<1x256xf32> to vector<24x256xf32>
      %29 = arith.addf %26, %28 : vector<24x256xf32>
      %cst_22 = arith.constant 5.000000e-01 : f32
      %30 = vector.broadcast %cst_22 : f32 to vector<24x256xf32>
      %31 = arith.mulf %30, %29 : vector<24x256xf32>
      %cst_23 = arith.constant 0.707106769 : f32
      %32 = vector.broadcast %cst_23 : f32 to vector<24x256xf32>
      %33 = arith.mulf %29, %32 : vector<24x256xf32>
      %34 = math.erf %33 : vector<24x256xf32>
      %cst_24 = arith.constant 1.000000e+00 : f32
      %35 = vector.broadcast %cst_24 : f32 to vector<24x256xf32>
      %36 = arith.addf %35, %34 : vector<24x256xf32>
      %37 = arith.mulf %31, %36 : vector<24x256xf32>
      %38 = arith.truncf %37 : vector<24x256xf32> to vector<24x256xbf16>
      %c0_25 = arith.constant 0 : index
      %c0_26 = arith.constant 0 : index
      %39 = vector.load %arg7[%c0_25, %c0_26] : memref<256x128xbf16, #tpu.memory_space<vmem>>, vector<256x128xbf16>
      %cst_27 = arith.constant dense<0.000000e+00> : vector<24x128xf32>
      %40 = tpu.matmul %38, %39, %cst_27 {dimension_numbers = #tpu.dot_dimension_numbers<[1], [0], [0], [1], [0, 0, 1, 1], [], []>} : vector<24x256xbf16>, vector<256x128xbf16>, vector<24x128xf32> -> vector<24x128xf32>
      %c0_28 = arith.constant 0 : index
      %c0_29 = arith.constant 0 : index
      %41 = vector.load %arg8[%c0_28, %c0_29] : memref<1x128xf32, #tpu.memory_space<vmem>>, vector<1x128xf32>
      %42 = vector.broadcast %41 : vector<1x128xf32> to vector<24x128xf32>
      %43 = arith.addf %40, %42 : vector<24x128xf32>
      %c0_30 = arith.constant 0 : index
      %c0_31 = arith.constant 0 : index
      %44 = vector.load %arg9[%c0_30, %c0_31] : memref<24x128xf32, #tpu.memory_space<vmem>>, vector<24x128xf32>
      tpu.vector_store %arg9[%c0_30, %c0_31], %43 {strides = array<i32>} : memref<24x128xf32, #tpu.memory_space<vmem>>, vector<24x128xf32>,
    } else {
    }
    return
  }
  func.func @transform_0(%arg0: i32, %arg1: i32) -> (i32, i32) {
    %c0_i32 = arith.constant 0 : i32
    %c0_i32_0 = arith.constant 0 : i32
    return %arg0, %c0_i32 : i32, i32
  }
  func.func @transform_1(%arg0: i32, %arg1: i32) -> (i32, i32) {
    %c0_i32 = arith.constant 0 : i32
    %c0_i32_0 = arith.constant 0 : i32
    %c0_i32_1 = arith.constant 0 : i32
    return %c0_i32, %c0_i32_0 : i32, i32
  }
  func.func @transform_2(%arg0: i32, %arg1: i32) -> (i32, i32) {
    %c0_i32 = arith.constant 0 : i32
    %c0_i32_0 = arith.constant 0 : i32
    %c0_i32_1 = arith.constant 0 : i32
    return %c0_i32, %c0_i32_0 : i32, i32
  }
  func.func @transform_3(%arg0: i32, %arg1: i32) -> (i32, i32) {
    %c0_i32 = arith.constant 0 : i32
    %c0_i32_0 = arith.constant 0 : i32
    %c0_i32_1 = arith.constant 0 : i32
    return %c0_i32, %c0_i32_0 : i32, i32
  }
  func.func @transform_4(%arg0: i32, %arg1: i32) -> (i32, i32) {
    %c0_i32 = arith.constant 0 : i32
    %c0_i32_0 = arith.constant 0 : i32
    %c0_i32_1 = arith.constant 0 : i32
    return %c0_i32, %c0_i32_0 : i32, i32
  }
  func.func @transform_5(%arg0: i32, %arg1: i32) -> (i32, i32) {
    %c0_i32 = arith.constant 0 : i32
    %c0_i32_0 = arith.constant 0 : i32
    %c0_i32_1 = arith.constant 0 : i32
    return %c0_i32, %c0_i32_0 : i32, i32
  }
  func.func @transform_6(%arg0: i32, %arg1: i32) -> (i32, i32) {
    %c0_i32 = arith.constant 0 : i32
    %c0_i32_0 = arith.constant 0 : i32
    %c0_i32_1 = arith.constant 0 : i32
    return %c0_i32, %c0_i32_0 : i32, i32
  }
  func.func @transform_7(%arg0: i32, %arg1: i32) -> (i32, i32) {
    %c0_i32 = arith.constant 0 : i32
    %c0_i32_0 = arith.constant 0 : i32
    return %arg0, %c0_i32 : i32, i32
  }
}

module attributes {stable_mosaic.version = 11 : i64} {
  func.func @dino_mlp_kernel(%arg0: i32, %arg1: i32, %arg2: memref<24x128xbf16, #tpu.memory_space<vmem>>, %arg3: memref<128x256xbf16, #tpu.memory_space<vmem>>, %arg4: memref<1x256xf32, #tpu.memory_space<vmem>>, %arg5: memref<256x256xbf16, #tpu.memory_space<vmem>>, %arg6: memref<1x256xf32, #tpu.memory_space<vmem>>, %arg7: memref<256x128xbf16, #tpu.memory_space<vmem>>, %arg8: memref<1x128xf32, #tpu.memory_space<vmem>>, %arg9: memref<24x128xf32, #tpu.memory_space<vmem>>, %arg10: memref<24x256xf32, #tpu.memory_space<vmem>>) attributes {dimension_semantics = [#tpu.dimension_semantics<parallel>, #tpu.dimension_semantics<arbitrary>], iteration_bounds = array<i64: 1, 1>, scalar_prefetch = 0 : i64, scratch_operands = 1 : i64, tpu.core_type = #tpu.core_type<tc>, window_params = [{transform_indices = @transform_0, window_bounds = array<i64: 24, 128>}, {pipeline_mode = #tpu.pipeline_mode<synchronous>, transform_indices = @transform_1, window_bounds = array<i64: 128, 256>}, {pipeline_mode = #tpu.pipeline_mode<synchronous>, transform_indices = @transform_2, window_bounds = array<i64: 1, 256>}, {pipeline_mode = #tpu.pipeline_mode<synchronous>, transform_indices = @transform_3, window_bounds = array<i64: 256, 256>}, {pipeline_mode = #tpu.pipeline_mode<synchronous>, transform_indices = @transform_4, window_bounds = array<i64: 1, 256>}, {pipeline_mode = #tpu.pipeline_mode<synchronous>, transform_indices = @transform_5, window_bounds = array<i64: 256, 128>}, {pipeline_mode = #tpu.pipeline_mode<synchronous>, transform_indices = @transform_6, window_bounds = array<i64: 1, 128>}, {transform_indices = @transform_7, window_bounds = array<i64: 24, 128>}]} {
    %c0_i32 = arith.constant 0 : i32
    %0 = arith.cmpi eq, %arg1, %c0_i32 : i32
    %1 = arith.extui %0 : i1 to i32
    %c0_i32_0 = arith.constant 0 : i32
    %2 = arith.cmpi ne, %1, %c0_i32_0 : i32
    scf.if %2 {
      %cst_18 = arith.constant 0.000000e+00 : f32
      %26 = vector.broadcast %cst_18 : f32 to vector<24x256xf32>
      %c0_19 = arith.constant 0 : index
      %c0_20 = arith.constant 0 : index
      %27 = vector.load %arg10[%c0_19, %c0_20] : memref<24x256xf32, #tpu.memory_space<vmem>>, vector<24x256xf32>
      tpu.vector_store %arg10[%c0_19, %c0_20], %26 {strides = array<i32>} : memref<24x256xf32, #tpu.memory_space<vmem>>, vector<24x256xf32>,
    } else {
    }
    %c0 = arith.constant 0 : index
    %c0_1 = arith.constant 0 : index
    %3 = vector.load %arg2[%c0, %c0_1] : memref<24x128xbf16, #tpu.memory_space<vmem>>, vector<24x128xbf16>
    %c0_2 = arith.constant 0 : index
    %c0_3 = arith.constant 0 : index
    %4 = vector.load %arg3[%c0_2, %c0_3] : memref<128x256xbf16, #tpu.memory_space<vmem>>, vector<128x256xbf16>
    %cst = arith.constant dense<0.000000e+00> : vector<24x256xf32>
    %5 = tpu.matmul %3, %4, %cst {dimension_numbers = #tpu.dot_dimension_numbers<[1], [0], [0], [1], [0, 0, 1, 1], [], []>} : vector<24x128xbf16>, vector<128x256xbf16>, vector<24x256xf32> -> vector<24x256xf32>
    %c0_4 = arith.constant 0 : index
    %c0_5 = arith.constant 0 : index
    %6 = vector.load %arg4[%c0_4, %c0_5] : memref<1x256xf32, #tpu.memory_space<vmem>>, vector<1x256xf32>
    %7 = vector.broadcast %6 : vector<1x256xf32> to vector<24x256xf32>
    %8 = arith.addf %5, %7 : vector<24x256xf32>
    %cst_6 = arith.constant 5.000000e-01 : f32
    %9 = vector.broadcast %cst_6 : f32 to vector<24x256xf32>
    %10 = arith.mulf %9, %8 : vector<24x256xf32>
    %cst_7 = arith.constant 0.707106769 : f32
    %11 = vector.broadcast %cst_7 : f32 to vector<24x256xf32>
    %12 = arith.mulf %8, %11 : vector<24x256xf32>
    %13 = math.erf %12 : vector<24x256xf32>
    %cst_8 = arith.constant 1.000000e+00 : f32
    %14 = vector.broadcast %cst_8 : f32 to vector<24x256xf32>
    %15 = arith.addf %14, %13 : vector<24x256xf32>
    %16 = arith.mulf %10, %15 : vector<24x256xf32>
    %c0_9 = arith.constant 0 : index
    %c0_10 = arith.constant 0 : index
    %17 = vector.load %arg10[%c0_9, %c0_10] : memref<24x256xf32, #tpu.memory_space<vmem>>, vector<24x256xf32>
    %18 = arith.truncf %16 : vector<24x256xf32> to vector<24x256xbf16>
    %c0_11 = arith.constant 0 : index
    %c0_12 = arith.constant 0 : index
    %19 = vector.load %arg5[%c0_11, %c0_12] : memref<256x256xbf16, #tpu.memory_space<vmem>>, vector<256x256xbf16>
    %cst_13 = arith.constant dense<0.000000e+00> : vector<24x256xf32>
    %20 = tpu.matmul %18, %19, %cst_13 {dimension_numbers = #tpu.dot_dimension_numbers<[1], [0], [0], [1], [0, 0, 1, 1], [], []>} : vector<24x256xbf16>, vector<256x256xbf16>, vector<24x256xf32> -> vector<24x256xf32>
    %21 = arith.addf %17, %20 : vector<24x256xf32>
    %c0_14 = arith.constant 0 : index
    %c0_15 = arith.constant 0 : index
    %22 = vector.load %arg10[%c0_14, %c0_15] : memref<24x256xf32, #tpu.memory_space<vmem>>, vector<24x256xf32>
    tpu.vector_store %arg10[%c0_14, %c0_15], %21 {strides = array<i32>} : memref<24x256xf32, #tpu.memory_space<vmem>>, vector<24x256xf32>,
    %c0_i32_16 = arith.constant 0 : i32
    %23 = arith.cmpi eq, %arg1, %c0_i32_16 : i32
    %24 = arith.extui %23 : i1 to i32
    %c0_i32_17 = arith.constant 0 : i32
    %25 = arith.cmpi ne, %24, %c0_i32_17 : i32
    scf.if %25 {
      %c0_18 = arith.constant 0 : index
      %c0_19 = arith.constant 0 : index
      %26 = vector.load %arg10[%c0_18, %c0_19] : memref<24x256xf32, #tpu.memory_space<vmem>>, vector<24x256xf32>
      %c0_20 = arith.constant 0 : index
      %c0_21 = arith.constant 0 : index
      %27 = vector.load %arg6[%c0_20, %c0_21] : memref<1x256xf32, #tpu.memory_space<vmem>>, vector<1x256xf32>
      %28 = vector.broadcast %27 : vector<1x256xf32> to vector<24x256xf32>
      %29 = arith.addf %26, %28 : vector<24x256xf32>
      %cst_22 = arith.constant 5.000000e-01 : f32
      %30 = vector.broadcast %cst_22 : f32 to vector<24x256xf32>
      %31 = arith.mulf %30, %29 : vector<24x256xf32>
      %cst_23 = arith.constant 0.707106769 : f32
      %32 = vector.broadcast %cst_23 : f32 to vector<24x256xf32>
      %33 = arith.mulf %29, %32 : vector<24x256xf32>
      %34 = math.erf %33 : vector<24x256xf32>
      %cst_24 = arith.constant 1.000000e+00 : f32
      %35 = vector.broadcast %cst_24 : f32 to vector<24x256xf32>
      %36 = arith.addf %35, %34 : vector<24x256xf32>
      %37 = arith.mulf %31, %36 : vector<24x256xf32>
      %38 = arith.truncf %37 : vector<24x256xf32> to vector<24x256xbf16>
      %c0_25 = arith.constant 0 : index
      %c0_26 = arith.constant 0 : index
      %39 = vector.load %arg7[%c0_25, %c0_26] : memref<256x128xbf16, #tpu.memory_space<vmem>>, vector<256x128xbf16>
      %cst_27 = arith.constant dense<0.000000e+00> : vector<24x128xf32>
      %40 = tpu.matmul %38, %39, %cst_27 {dimension_numbers = #tpu.dot_dimension_numbers<[1], [0], [0], [1], [0, 0, 1, 1], [], []>} : vector<24x256xbf16>, vector<256x128xbf16>, vector<24x128xf32> -> vector<24x128xf32>
      %c0_28 = arith.constant 0 : index
      %c0_29 = arith.constant 0 : index
      %41 = vector.load %arg8[%c0_28, %c0_29] : memref<1x128xf32, #tpu.memory_space<vmem>>, vector<1x128xf32>
      %42 = vector.broadcast %41 : vector<1x128xf32> to vector<24x128xf32>
      %43 = arith.addf %40, %42 : vector<24x128xf32>
      %c0_30 = arith.constant 0 : index
      %c0_31 = arith.constant 0 : index
      %44 = vector.load %arg9[%c0_30, %c0_31] : memref<24x128xf32, #tpu.memory_space<vmem>>, vector<24x128xf32>
      tpu.vector_store %arg9[%c0_30, %c0_31], %43 {strides = array<i32>} : memref<24x128xf32, #tpu.memory_space<vmem>>, vector<24x128xf32>,
    } else {
    }
    return
  }
  func.func @transform_0(%arg0: i32, %arg1: i32) -> (i32, i32) {
    %c0_i32 = arith.constant 0 : i32
    %c0_i32_0 = arith.constant 0 : i32
    return %arg0, %c0_i32 : i32, i32
  }
  func.func @transform_1(%arg0: i32, %arg1: i32) -> (i32, i32) {
    %c0_i32 = arith.constant 0 : i32
    %c0_i32_0 = arith.constant 0 : i32
    %c0_i32_1 = arith.constant 0 : i32
    return %c0_i32, %c0_i32_0 : i32, i32
  }
  func.func @transform_2(%arg0: i32, %arg1: i32) -> (i32, i32) {
    %c0_i32 = arith.constant 0 : i32
    %c0_i32_0 = arith.constant 0 : i32
    %c0_i32_1 = arith.constant 0 : i32
    return %c0_i32, %c0_i32_0 : i32, i32
  }
  func.func @transform_3(%arg0: i32, %arg1: i32) -> (i32, i32) {
    %c0_i32 = arith.constant 0 : i32
    %c0_i32_0 = arith.constant 0 : i32
    %c0_i32_1 = arith.constant 0 : i32
    return %c0_i32, %c0_i32_0 : i32, i32
  }
  func.func @transform_4(%arg0: i32, %arg1: i32) -> (i32, i32) {
    %c0_i32 = arith.constant 0 : i32
    %c0_i32_0 = arith.constant 0 : i32
    %c0_i32_1 = arith.constant 0 : i32
    return %c0_i32, %c0_i32_0 : i32, i32
  }
  func.func @transform_5(%arg0: i32, %arg1: i32) -> (i32, i32) {
    %c0_i32 = arith.constant 0 : i32
    %c0_i32_0 = arith.constant 0 : i32
    %c0_i32_1 = arith.constant 0 : i32
    return %c0_i32, %c0_i32_0 : i32, i32
  }
  func.func @transform_6(%arg0: i32, %arg1: i32) -> (i32, i32) {
    %c0_i32 = arith.constant 0 : i32
    %c0_i32_0 = arith.constant 0 : i32
    %c0_i32_1 = arith.constant 0 : i32
    return %c0_i32, %c0_i32_0 : i32, i32
  }
  func.func @transform_7(%arg0: i32, %arg1: i32) -> (i32, i32) {
    %c0_i32 = arith.constant 0 : i32
    %c0_i32_0 = arith.constant 0 : i32
    return %arg0, %c0_i32 : i32, i32
  }
}

</mosaic_0001>

<llo_original>
// kernel: tpu_custom_call.1
$region0: #{tpu_custom_call.1}
  #allocation0 [shape = 'u32[]', space=smem, size = 0x4, offset = 0x4, fixed_abs, tag = 'smem constant byte address 0x4 - core index']
  #allocation1 [shape = 'u32[144,128]{1,0:T(1,128)}', space=vmem, size = 0x12000, scoped, tag = 'internal scratch']
  #allocation2 [shape = 'f32[24,256]{1,0:T(8,128)}', space=vmem, size = 0x6000, scoped, tag = 'scratch operand']
  %s0 = inlined_call_operand.hbm [shape: bf16[24,128], index: 0, kind: input, shape index: {}]
  %s1 = inlined_call_operand.hbm [shape: bf16[128,256], index: 1, kind: input, shape index: {}]
  %s2 = inlined_call_operand.vmem [shape: f32[1,256], index: 2, kind: input, shape index: {}]
  %s3 = inlined_call_operand.hbm [shape: bf16[256,256], index: 3, kind: input, shape index: {}]
  %s4 = inlined_call_operand.vmem [shape: f32[1,256], index: 4, kind: input, shape index: {}]
  %s5 = inlined_call_operand.hbm [shape: bf16[256,128], index: 5, kind: input, shape index: {}]
  %s6 = inlined_call_operand.vmem [shape: f32[1,128], index: 6, kind: input, shape index: {}]
  %s7 = inlined_call_operand.hbm [shape: f32[24,128], index: 7, kind: output, shape index: {}]
  %s8 = sld [smem:[#allocation0]]
  $region62: #{tpu_custom_call.1} parent=0
    _
  %s10 = ssub.s32 1, %s8
  %s11 = scalar_select 0, %s10, %s8
  $region1: #{tpu_custom_call.1} parent=0
    #allocation3 [shape = 'u8[6144]{0}', space=vmem, size = 0x1800, scoped, tag = 'input window, operand 0, single buffered']
    #allocation4 [shape = 's32[1]{0}', space=sflag, size = 0x4, scoped, tag = 'scoped memory for tpu_custom_call.1']
    #allocation5 [shape = 's32[1]{0}', space=sflag, size = 0x4, scoped, tag = 'scoped memory for tpu_custom_call.1']
    #allocation6 [shape = 'u8[65536]{0}', space=vmem, size = 0x10000, scoped, tag = 'input window, operand 1, single buffered']
    #allocation7 [shape = 's32[1]{0}', space=sflag, size = 0x4, scoped, tag = 'scoped memory for tpu_custom_call.1']
    #allocation8 [shape = 'u8[131072]{0}', space=vmem, size = 0x20000, scoped, tag = 'input window, operand 3, single buffered']
    #allocation9 [shape = 'u8[65536]{0}', space=vmem, size = 0x10000, scoped, tag = 'input window, operand 5, single buffered']
    #allocation10 [shape = 's32[1]{0}', space=sflag, size = 0x4, scoped, tag = 'scoped memory for tpu_custom_call.1']
    #allocation11 [shape = 'u8[12288]{0}', space=vmem, size = 0x3000, scoped, tag = 'output window, operand 0, single buffered']
    %12 = vsyncpa [#allocation4], 0
    %13 = vsyncpa [#allocation7], 0
    %14 = vsyncpa [#allocation10], 0
    %15 = vsyncpa [#allocation5], 0
    // Predicated region
    $region2: #{tpu_custom_call.1} parent=1 // pred_check
      _
    $region3: #{tpu_custom_call.1} parent=1 // pred_check_branch
      %17 = sbr.rel (0) target = $region5
    $region4: #{tpu_custom_call.1} parent=1 // pred_region
      %s19 = ssub.s32 192, 192
      %20 = vsyncadd [#allocation4], %s19
      %s21 = sshll.u32 [#allocation3], 4
      %s22 = int_to_ptr.vmem [resolvable:$true] %s21
      %27 = dma.hbm_to_vmem [thread:$0]  %s0, 192, %s22, [#allocation4], 64, 64, 4
    $region5: #{tpu_custom_call.1} parent=1 // pred_fallthru
      _
    // Predicated region
    $region6: #{tpu_custom_call.1} parent=1 // pred_check
      _
    $region7: #{tpu_custom_call.1} parent=1 // pred_check_branch
      %29 = sbr.rel (0) target = $region9
    $region8: #{tpu_custom_call.1} parent=1 // pred_region
      %s31 = ssub.s32 2048, 2048
      %32 = vsyncadd [#allocation7], %s31
      %s33 = sshll.u32 [#allocation6], 4
      %s34 = int_to_ptr.vmem [resolvable:$true] %s33
      %39 = dma.hbm_to_vmem [thread:$0]  %s1, 2048, %s34, [#allocation7], 128, 128, 8
    $region9: #{tpu_custom_call.1} parent=1 // pred_fallthru
      _
    // Predicated region
    $region10: #{tpu_custom_call.1} parent=1 // pred_check
      _
    $region11: #{tpu_custom_call.1} parent=1 // pred_check_branch
      %41 = sbr.rel (0) target = $region13
    $region12: #{tpu_custom_call.1} parent=1 // pred_region
      _
    $region13: #{tpu_custom_call.1} parent=1 // pred_fallthru
      _
    // Predicated region
    $region14: #{tpu_custom_call.1} parent=1 // pred_check
      _
    $region15: #{tpu_custom_call.1} parent=1 // pred_check_branch
      %43 = sbr.rel (0) target = $region17
    $region16: #{tpu_custom_call.1} parent=1 // pred_region
      %s45 = ssub.s32 4096, 4096
      %46 = vsyncadd [#allocation7], %s45
      %s47 = sshll.u32 [#allocation8], 4
      %s48 = int_to_ptr.vmem [resolvable:$true] %s47
      %53 = dma.hbm_to_vmem [thread:$0]  %s3, 4096, %s48, [#allocation7], 128, 128, 8
    $region17: #{tpu_custom_call.1} parent=1 // pred_fallthru
      _
    // Predicated region
    $region18: #{tpu_custom_call.1} parent=1 // pred_check
      _
    $region19: #{tpu_custom_call.1} parent=1 // pred_check_branch
      %55 = sbr.rel (0) target = $region21
    $region20: #{tpu_custom_call.1} parent=1 // pred_region
      _
    $region21: #{tpu_custom_call.1} parent=1 // pred_fallthru
      _
    // Predicated region
    $region22: #{tpu_custom_call.1} parent=1 // pred_check
      _
    $region23: #{tpu_custom_call.1} parent=1 // pred_check_branch
      %57 = sbr.rel (0) target = $region25
    $region24: #{tpu_custom_call.1} parent=1 // pred_region
      %s59 = ssub.s32 2048, 2048
      %60 = vsyncadd [#allocation10], %s59
      %s61 = sshll.u32 [#allocation9], 4
      %s62 = int_to_ptr.vmem [resolvable:$true] %s61
      %67 = dma.hbm_to_vmem [thread:$0]  %s5, 2048, %s62, [#allocation10], 64, 64, 4
    $region25: #{tpu_custom_call.1} parent=1 // pred_fallthru
      _
    // Predicated region
    $region26: #{tpu_custom_call.1} parent=1 // pred_check
      _
    $region27: #{tpu_custom_call.1} parent=1 // pred_check_branch
      %69 = sbr.rel (0) target = $region29
    $region28: #{tpu_custom_call.1} parent=1 // pred_region
      _
    $region29: #{tpu_custom_call.1} parent=1 // pred_fallthru
      _
    // Predicated region
    $region30: #{tpu_custom_call.1} parent=1 // pred_check
      _
    $region31: #{tpu_custom_call.1} parent=1 // pred_check_branch
      %71 = sbr.rel (0) target = $region33
    $region32: #{tpu_custom_call.1} parent=1 // pred_region
      %72 = dma.done [#allocation4], 192
    $region33: #{tpu_custom_call.1} parent=1 // pred_fallthru
      _
    // Predicated region
    $region34: #{tpu_custom_call.1} parent=1 // pred_check
      _
    $region35: #{tpu_custom_call.1} parent=1 // pred_check_branch
      %74 = sbr.rel (0) target = $region37
    $region36: #{tpu_custom_call.1} parent=1 // pred_region
      %75 = dma.done [#allocation7], 2048
    $region37: #{tpu_custom_call.1} parent=1 // pred_fallthru
      _
    // Predicated region
    $region38: #{tpu_custom_call.1} parent=1 // pred_check
      _
    $region39: #{tpu_custom_call.1} parent=1 // pred_check_branch
      %77 = sbr.rel (0) target = $region41
    $region40: #{tpu_custom_call.1} parent=1 // pred_region
      %78 = dma.done [#allocation7], 4096
    $region41: #{tpu_custom_call.1} parent=1 // pred_fallthru
      _
    // Predicated region
    $region42: #{tpu_custom_call.1} parent=1 // pred_check
      _
    $region43: #{tpu_custom_call.1} parent=1 // pred_check_branch
      %80 = sbr.rel (0) target = $region45
    $region44: #{tpu_custom_call.1} parent=1 // pred_region
      %81 = dma.done [#allocation10], 2048
    $region45: #{tpu_custom_call.1} parent=1 // pred_fallthru
      _
    %p83 = scmp.eq.s32.totalorder 0, 0
    // Predicated region
    $region46: #{tpu_custom_call.1} parent=1 // pred_check
      %p84 = pneg %p83
    $region47: #{tpu_custom_call.1} parent=1 // pred_check_branch
      %86 = sbr.rel (%p84) target = $region49
    $region48: #{tpu_custom_call.1} parent=1 // pred_region
      %87 = vst [vmem:[#allocation2] sm:$0xff] 0.0
      %88 = vst [vmem:[#allocation2 + $0x8] sm:$0xff] 0.0
      %89 = vst [vmem:[#allocation2 + $0x10] sm:$0xff] 0.0
      %90 = vst [vmem:[#allocation2 + $0x18] sm:$0xff] 0.0
      %91 = vst [vmem:[#allocation2 + $0x20] sm:$0xff] 0.0
      %92 = vst [vmem:[#allocation2 + $0x28] sm:$0xff] 0.0
    $region49: #{tpu_custom_call.1} parent=1 // pred_fallthru
      _
    %v93 = vld [vmem:[#allocation3] sm:$0xf]
    %v94 = vld [vmem:[#allocation3 + $0x4] sm:$0xf]
    %v95 = vld [vmem:[#allocation3 + $0x8] sm:$0xf]
    %v96 = vld [vmem:[#allocation6] sm:$0xff]
    %v97 = vld [vmem:[#allocation6 + $0x8] sm:$0xff]
    %v98 = vld [vmem:[#allocation6 + $0x10] sm:$0xff]
    %v99 = vld [vmem:[#allocation6 + $0x18] sm:$0xff]
    %v100 = vld [vmem:[#allocation6 + $0x20] sm:$0xff]
    %v101 = vld [vmem:[#allocation6 + $0x28] sm:$0xff]
    %v102 = vld [vmem:[#allocation6 + $0x30] sm:$0xff]
    %v103 = vld [vmem:[#allocation6 + $0x38] sm:$0xff]
    %v104 = vld [vmem:[#allocation6 + $0x40] sm:$0xff]
    %v105 = vld [vmem:[#allocation6 + $0x48] sm:$0xff]
    %v106 = vld [vmem:[#allocation6 + $0x50] sm:$0xff]
    %v107 = vld [vmem:[#allocation6 + $0x58] sm:$0xff]
    %v108 = vld [vmem:[#allocation6 + $0x60] sm:$0xff]
    %v109 = vld [vmem:[#allocation6 + $0x68] sm:$0xff]
    %v110 = vld [vmem:[#allocation6 + $0x70] sm:$0xff]
    %v111 = vld [vmem:[#allocation6 + $0x78] sm:$0xff]
    %v112 = vld [vmem:[%s2] sm:$0x3]
    %v114 = vlaneseq
    %v115 = vshrl.u32 %v114, 7
    %v116 = vsub.s32 0, %v115
    %v117 = vrot.slane %v112, %v116
    %v118 = vlaneseq
    %v119 = vshrl.u32 %v118, 7
    %v120 = vsub.s32 1, %v119
    %v121 = vrot.slane %v112, %v120
    %v127 = vunpack.c.l.b16 %v93
    %v128 = vunpack.c.l.b16 %v94
    %v129 = vunpack.c.l.b16 %v95
    %v130 = vpack.c.b16 %v128, %v127
    %v131 = vpack.c.b16 %v129, %v129
    %v150 = vunpack.c.l.b16 %v96
    %v151 = vunpack.c.h.b16 %v96
    %v152 = vunpack.c.l.b16 %v97
    %v153 = vunpack.c.h.b16 %v97
    %v154 = vunpack.c.l.b16 %v98
    %v155 = vunpack.c.h.b16 %v98
    %v156 = vunpack.c.l.b16 %v99
    %v157 = vunpack.c.h.b16 %v99
    %v158 = vunpack.c.l.b16 %v100
    %v159 = vunpack.c.h.b16 %v100
    %v160 = vunpack.c.l.b16 %v101
    %v161 = vunpack.c.h.b16 %v101
    %v162 = vunpack.c.l.b16 %v102
    %v163 = vunpack.c.h.b16 %v102
    %v164 = vunpack.c.l.b16 %v103
    %v165 = vunpack.c.h.b16 %v103
    %v166 = vunpack.c.l.b16 %v104
    %v167 = vunpack.c.h.b16 %v104
    %v168 = vunpack.c.l.b16 %v105
    %v169 = vunpack.c.h.b16 %v105
    %v170 = vunpack.c.l.b16 %v106
    %v171 = vunpack.c.h.b16 %v106
    %v172 = vunpack.c.l.b16 %v107
    %v173 = vunpack.c.h.b16 %v107
    %v174 = vunpack.c.l.b16 %v108
    %v175 = vunpack.c.h.b16 %v108
    %v176 = vunpack.c.l.b16 %v109
    %v177 = vunpack.c.h.b16 %v109
    %v178 = vunpack.c.l.b16 %v110
    %v179 = vunpack.c.h.b16 %v110
    %v180 = vunpack.c.l.b16 %v111
    %v181 = vunpack.c.h.b16 %v111
    %v182 = vpack.c.b16 %v152, %v150
    %v183 = vpack.c.b16 %v153, %v151
    %v184 = vpack.c.b16 %v156, %v154
    %v185 = vpack.c.b16 %v157, %v155
    %v186 = vpack.c.b16 %v160, %v158
    %v187 = vpack.c.b16 %v161, %v159
    %v188 = vpack.c.b16 %v164, %v162
    %v189 = vpack.c.b16 %v165, %v163
    %v190 = vpack.c.b16 %v168, %v166
    %v191 = vpack.c.b16 %v169, %v167
    %v192 = vpack.c.b16 %v172, %v170
    %v193 = vpack.c.b16 %v173, %v171
    %v194 = vpack.c.b16 %v176, %v174
    %v195 = vpack.c.b16 %v177, %v175
    %v196 = vpack.c.b16 %v180, %v178
    %v197 = vpack.c.b16 %v181, %v179
    %214 = vmatprep.subr.bf16.mxu0 %v197
    %215 = vmatpush1.bf16.msra.mxu0 %v196
    %216 = vmatprep.subr.bf16.mxu0 %v195
    %217 = vmatpush1.bf16.msra.mxu0 %v194
    %218 = vmatprep.subr.bf16.mxu0 %v193
    %219 = vmatpush1.bf16.msra.mxu0 %v192
    %220 = vmatprep.subr.bf16.mxu0 %v191
    %221 = vmatpush1.bf16.msra.mxu0 %v190
    %222 = vmatprep.subr.bf16.mxu0 %v189
    %223 = vmatpush1.bf16.msra.mxu0 %v188
    %224 = vmatprep.subr.bf16.mxu0 %v187
    %225 = vmatpush1.bf16.msra.mxu0 %v186
    %226 = vmatprep.subr.bf16.mxu0 %v185
    %227 = vmatpush1.bf16.msra.mxu0 %v184
    %228 = vmatprep.subr.bf16.mxu0 %v183
    %229 = vmatpush1.bf16.msra.mxu0 %v182
    %230 = vmatprep.subr.bf16.mxu0 0
    %231 = vmatpush2.bf16.msra.mxu0 0
    %232 = vmatprep.subr.bf16.mxu0 0
    %233 = vmatpush2.bf16.msra.mxu0 0
    %234 = vmatprep.subr.bf16.mxu0 0
    %235 = vmatpush2.bf16.msra.mxu0 0
    %236 = vmatprep.subr.bf16.mxu0 0
    %237 = vmatpush2.bf16.msra.mxu0 0
    %238 = vmatprep.subr.bf16.mxu0 0
    %239 = vmatpush2.bf16.msra.mxu0 0
    %240 = vmatprep.subr.bf16.mxu0 0
    %241 = vmatpush2.bf16.msra.mxu0 0
    %242 = vmatprep.subr.bf16.mxu0 0
    %243 = vmatpush2.bf16.msra.mxu0 0
    %244 = vmatprep.subr.bf16.mxu0 0
    %245 = vmatpush2.bf16.msra.mxu0 0
    %246 = vmatprep.mubr.bf16.mxu0 0
    %247 = vmatmul.mubr.bf16.gmra.mxu0 %v130
    %v248 = vpop.f32.mrf.mxu0
    %v249 = vadd.f32 %v117, %v248
    %v250 = vpop.f32.mrf.mxu0
    %v251 = vadd.f32 %v121, %v250
    %v252 = vpop.f32.mrf.mxu0
    %v253 = vadd.f32 %v117, %v252
    %v254 = vpop.f32.mrf.mxu0
    %v255 = vadd.f32 %v121, %v254
    %256 = vmatprep.mubr.bf16.mxu0 0
    %257 = vmatmul.mubr.bf16.gmra.mxu0 %v131
    %v258 = vpop.f32.mrf.mxu0
    %v259 = vadd.f32 %v117, %v258
    %v260 = vpop.f32.mrf.mxu0
    %v261 = vadd.f32 %v121, %v260
    %v262 = vpop.f32.mrf.mxu0
    %v263 = vpop.f32.mrf.mxu0
    %264 = vdwg.mxu0
    %v265 = vmul.f32 %v249, 0.5
    %v266 = vmul.f32 %v251, 0.5
    %v267 = vmul.f32 %v253, 0.5
    %v268 = vmul.f32 %v255, 0.5
    %v269 = vmul.f32 %v259, 0.5
    %v270 = vmul.f32 %v261, 0.5
    %v271 = vmul.f32 %v249, 0.70710677
    %v272 = vmul.f32 %v251, 0.70710677
    %v273 = vmul.f32 %v253, 0.70710677
    %v274 = vmul.f32 %v255, 0.70710677
    %v275 = vmul.f32 %v259, 0.70710677
    %v276 = vmul.f32 %v261, 0.70710677
    %v277 = verf.f32.pop %v271
    %v278 = verf.f32.pop %v272
    %v279 = verf.f32.pop %v273
    %v280 = verf.f32.pop %v274
    %v281 = verf.f32.pop %v275
    %v282 = verf.f32.pop %v276
    %v283 = vadd.f32 %v277, 1.0
    %v284 = vadd.f32 %v278, 1.0
    %v285 = vadd.f32 %v279, 1.0
    %v286 = vadd.f32 %v280, 1.0
    %v287 = vadd.f32 %v281, 1.0
    %v288 = vadd.f32 %v282, 1.0
    %v289 = vmul.f32 %v265, %v283
    %v290 = vmul.f32 %v266, %v284
    %v291 = vmul.f32 %v267, %v285
    %v292 = vmul.f32 %v268, %v286
    %v293 = vmul.f32 %v269, %v287
    %v294 = vmul.f32 %v270, %v288
    %v295 = vld [vmem:[#allocation2] sm:$0xff]
    %v296 = vld [vmem:[#allocation2 + $0x8] sm:$0xff]
    %v297 = vld [vmem:[#allocation2 + $0x10] sm:$0xff]
    %v298 = vld [vmem:[#allocation2 + $0x18] sm:$0xff]
    %v299 = vld [vmem:[#allocation2 + $0x20] sm:$0xff]
    %v300 = vld [vmem:[#allocation2 + $0x28] sm:$0xff]
    %v301 = vpack.c.bf16 %v291, %v289
    %v302 = vpack.c.bf16 %v292, %v290
    %v303 = vpack.c.bf16 %v293, %v293
    %v304 = vpack.c.bf16 %v294, %v294
    %v305 = vld [vmem:[#allocation8] sm:$0xff]
    %v306 = vld [vmem:[#allocation8 + $0x8] sm:$0xff]
    %v307 = vld [vmem:[#allocation8 + $0x10] sm:$0xff]
    %v308 = vld [vmem:[#allocation8 + $0x18] sm:$0xff]
    %v309 = vld [vmem:[#allocation8 + $0x20] sm:$0xff]
    %v310 = vld [vmem:[#allocation8 + $0x28] sm:$0xff]
    %v311 = vld [vmem:[#allocation8 + $0x30] sm:$0xff]
    %v312 = vld [vmem:[#allocation8 + $0x38] sm:$0xff]
    %v313 = vld [vmem:[#allocation8 + $0x40] sm:$0xff]
    %v314 = vld [vmem:[#allocation8 + $0x48] sm:$0xff]
    %v315 = vld [vmem:[#allocation8 + $0x50] sm:$0xff]
    %v316 = vld [vmem:[#allocation8 + $0x58] sm:$0xff]
    %v317 = vld [vmem:[#allocation8 + $0x60] sm:$0xff]
    %v318 = vld [vmem:[#allocation8 + $0x68] sm:$0xff]
    %v319 = vld [vmem:[#allocation8 + $0x70] sm:$0xff]
    %v320 = vld [vmem:[#allocation8 + $0x78] sm:$0xff]
    %v321 = vld [vmem:[#allocation8 + $0x80] sm:$0xff]
    %v322 = vld [vmem:[#allocation8 + $0x88] sm:$0xff]
    %v323 = vld [vmem:[#allocation8 + $0x90] sm:$0xff]
    %v324 = vld [vmem:[#allocation8 + $0x98] sm:$0xff]
    %v325 = vld [vmem:[#allocation8 + $0xa0] sm:$0xff]
    %v326 = vld [vmem:[#allocation8 + $0xa8] sm:$0xff]
    %v327 = vld [vmem:[#allocation8 + $0xb0] sm:$0xff]
    %v328 = vld [vmem:[#allocation8 + $0xb8] sm:$0xff]
    %v329 = vld [vmem:[#allocation8 + $0xc0] sm:$0xff]
    %v330 = vld [vmem:[#allocation8 + $0xc8] sm:$0xff]
    %v331 = vld [vmem:[#allocation8 + $0xd0] sm:$0xff]
    %v332 = vld [vmem:[#allocation8 + $0xd8] sm:$0xff]
    %v333 = vld [vmem:[#allocation8 + $0xe0] sm:$0xff]
    %v334 = vld [vmem:[#allocation8 + $0xe8] sm:$0xff]
    %v335 = vld [vmem:[#allocation8 + $0xf0] sm:$0xff]
    %v336 = vld [vmem:[#allocation8 + $0xf8] sm:$0xff]
    %v369 = vunpack.c.l.b16 %v305
    %v370 = vunpack.c.h.b16 %v305
    %v371 = vunpack.c.l.b16 %v306
    %v372 = vunpack.c.h.b16 %v306
    %v373 = vunpack.c.l.b16 %v307
    %v374 = vunpack.c.h.b16 %v307
    %v375 = vunpack.c.l.b16 %v308
    %v376 = vunpack.c.h.b16 %v308
    %v377 = vunpack.c.l.b16 %v309
    %v378 = vunpack.c.h.b16 %v309
    %v379 = vunpack.c.l.b16 %v310
    %v380 = vunpack.c.h.b16 %v310
    %v381 = vunpack.c.l.b16 %v311
    %v382 = vunpack.c.h.b16 %v311
    %v383 = vunpack.c.l.b16 %v312
    %v384 = vunpack.c.h.b16 %v312
    %v385 = vunpack.c.l.b16 %v313
    %v386 = vunpack.c.h.b16 %v313
    %v387 = vunpack.c.l.b16 %v314
    %v388 = vunpack.c.h.b16 %v314
    %v389 = vunpack.c.l.b16 %v315
    %v390 = vunpack.c.h.b16 %v315
    %v391 = vunpack.c.l.b16 %v316
    %v392 = vunpack.c.h.b16 %v316
    %v393 = vunpack.c.l.b16 %v317
    %v394 = vunpack.c.h.b16 %v317
    %v395 = vunpack.c.l.b16 %v318
    %v396 = vunpack.c.h.b16 %v318
    %v397 = vunpack.c.l.b16 %v319
    %v398 = vunpack.c.h.b16 %v319
    %v399 = vunpack.c.l.b16 %v320
    %v400 = vunpack.c.h.b16 %v320
    %v401 = vunpack.c.l.b16 %v321
    %v402 = vunpack.c.h.b16 %v321
    %v403 = vunpack.c.l.b16 %v322
    %v404 = vunpack.c.h.b16 %v322
    %v405 = vunpack.c.l.b16 %v323
    %v406 = vunpack.c.h.b16 %v323
    %v407 = vunpack.c.l.b16 %v324
    %v408 = vunpack.c.h.b16 %v324
    %v409 = vunpack.c.l.b16 %v325
    %v410 = vunpack.c.h.b16 %v325
    %v411 = vunpack.c.l.b16 %v326
    %v412 = vunpack.c.h.b16 %v326
    %v413 = vunpack.c.l.b16 %v327
    %v414 = vunpack.c.h.b16 %v327
    %v415 = vunpack.c.l.b16 %v328
    %v416 = vunpack.c.h.b16 %v328
    %v417 = vunpack.c.l.b16 %v329
    %v418 = vunpack.c.h.b16 %v329
    %v419 = vunpack.c.l.b16 %v330
    %v420 = vunpack.c.h.b16 %v330
    %v421 = vunpack.c.l.b16 %v331
    %v422 = vunpack.c.h.b16 %v331
    %v423 = vunpack.c.l.b16 %v332
    %v424 = vunpack.c.h.b16 %v332
    %v425 = vunpack.c.l.b16 %v333
    %v426 = vunpack.c.h.b16 %v333
    %v427 = vunpack.c.l.b16 %v334
    %v428 = vunpack.c.h.b16 %v334
    %v429 = vunpack.c.l.b16 %v335
    %v430 = vunpack.c.h.b16 %v335
    %v431 = vunpack.c.l.b16 %v336
    %v432 = vunpack.c.h.b16 %v336
    %v433 = vpack.c.b16 %v371, %v369
    %v434 = vpack.c.b16 %v372, %v370
    %v435 = vpack.c.b16 %v375, %v373
    %v436 = vpack.c.b16 %v376, %v374
    %v437 = vpack.c.b16 %v379, %v377
    %v438 = vpack.c.b16 %v380, %v378
    %v439 = vpack.c.b16 %v383, %v381
    %v440 = vpack.c.b16 %v384, %v382
    %v441 = vpack.c.b16 %v387, %v385
    %v442 = vpack.c.b16 %v388, %v386
    %v443 = vpack.c.b16 %v391, %v389
    %v444 = vpack.c.b16 %v392, %v390
    %v445 = vpack.c.b16 %v395, %v393
    %v446 = vpack.c.b16 %v396, %v394
    %v447 = vpack.c.b16 %v399, %v397
    %v448 = vpack.c.b16 %v400, %v398
    %v449 = vpack.c.b16 %v403, %v401
    %v450 = vpack.c.b16 %v404, %v402
    %v451 = vpack.c.b16 %v407, %v405
    %v452 = vpack.c.b16 %v408, %v406
    %v453 = vpack.c.b16 %v411, %v409
    %v454 = vpack.c.b16 %v412, %v410
    %v455 = vpack.c.b16 %v415, %v413
    %v456 = vpack.c.b16 %v416, %v414
    %v457 = vpack.c.b16 %v419, %v417
    %v458 = vpack.c.b16 %v420, %v418
    %v459 = vpack.c.b16 %v423, %v421
    %v460 = vpack.c.b16 %v424, %v422
    %v461 = vpack.c.b16 %v427, %v425
    %v462 = vpack.c.b16 %v428, %v426
    %v463 = vpack.c.b16 %v431, %v429
    %v464 = vpack.c.b16 %v432, %v430
    %497 = vmatprep.subr.bf16.mxu0 %v448
    %498 = vmatpush1.bf16.msra.mxu0 %v447
    %499 = vmatprep.subr.bf16.mxu0 %v446
    %500 = vmatpush1.bf16.msra.mxu0 %v445
    %501 = vmatprep.subr.bf16.mxu0 %v444
    %502 = vmatpush1.bf16.msra.mxu0 %v443
    %503 = vmatprep.subr.bf16.mxu0 %v442
    %504 = vmatpush1.bf16.msra.mxu0 %v441
    %505 = vmatprep.subr.bf16.mxu0 %v440
    %506 = vmatpush1.bf16.msra.mxu0 %v439
    %507 = vmatprep.subr.bf16.mxu0 %v438
    %508 = vmatpush1.bf16.msra.mxu0 %v437
    %509 = vmatprep.subr.bf16.mxu0 %v436
    %510 = vmatpush1.bf16.msra.mxu0 %v435
    %511 = vmatprep.subr.bf16.mxu0 %v434
    %512 = vmatpush1.bf16.msra.mxu0 %v433
    %513 = vmatprep.subr.bf16.mxu0 %v464
    %514 = vmatpush2.bf16.msra.mxu0 %v463
    %515 = vmatprep.subr.bf16.mxu0 %v462
    %516 = vmatpush2.bf16.msra.mxu0 %v461
    %517 = vmatprep.subr.bf16.mxu0 %v460
    %518 = vmatpush2.bf16.msra.mxu0 %v459
    %519 = vmatprep.subr.bf16.mxu0 %v458
    %520 = vmatpush2.bf16.msra.mxu0 %v457
    %521 = vmatprep.subr.bf16.mxu0 %v456
    %522 = vmatpush2.bf16.msra.mxu0 %v455
    %523 = vmatprep.subr.bf16.mxu0 %v454
    %524 = vmatpush2.bf16.msra.mxu0 %v453
    %525 = vmatprep.subr.bf16.mxu0 %v452
    %526 = vmatpush2.bf16.msra.mxu0 %v451
    %527 = vmatprep.subr.bf16.mxu0 %v450
    %528 = vmatpush2.bf16.msra.mxu0 %v449
    %529 = vmatprep.mubr.bf16.mxu0 %v302
    %530 = vmatmul.mubr.bf16.gmra.mxu0 %v301
    %v531 = vpop.f32.mrf.mxu0
    %v532 = vadd.f32 0.0, %v531
    %v533 = vpop.f32.mrf.mxu0
    %v534 = vadd.f32 0.0, %v533
    %v535 = vpop.f32.mrf.mxu0
    %v536 = vadd.f32 0.0, %v535
    %v537 = vpop.f32.mrf.mxu0
    %v538 = vadd.f32 0.0, %v537
    %539 = vmatprep.mubr.bf16.mxu0 %v304
    %540 = vmatmul.mubr.bf16.gmra.mxu0 %v303
    %v541 = vpop.f32.mrf.mxu0
    %v542 = vadd.f32 0.0, %v541
    %v543 = vpop.f32.mrf.mxu0
    %v544 = vadd.f32 0.0, %v543
    %v545 = vpop.f32.mrf.mxu0
    %v546 = vpop.f32.mrf.mxu0
    %547 = vdwg.mxu0
    %v548 = vadd.f32 %v295, %v532
    %v549 = vadd.f32 %v296, %v534
    %v550 = vadd.f32 %v297, %v536
    %v551 = vadd.f32 %v298, %v538
    %v552 = vadd.f32 %v299, %v542
    %v553 = vadd.f32 %v300, %v544
    %554 = vst [vmem:[#allocation2] sm:$0xff] %v548
    %555 = vst [vmem:[#allocation2 + $0x8] sm:$0xff] %v549
    %556 = vst [vmem:[#allocation2 + $0x10] sm:$0xff] %v550
    %557 = vst [vmem:[#allocation2 + $0x18] sm:$0xff] %v551
    %558 = vst [vmem:[#allocation2 + $0x20] sm:$0xff] %v552
    %559 = vst [vmem:[#allocation2 + $0x28] sm:$0xff] %v553
    // Predicated region
    $region50: #{tpu_custom_call.1} parent=1 // pred_check
      %p560 = pneg %p83
    $region51: #{tpu_custom_call.1} parent=1 // pred_check_branch
      %562 = sbr.rel (%p560) target = $region53
    $region52: #{tpu_custom_call.1} parent=1 // pred_region
      %v563 = vld [vmem:[#allocation2] sm:$0xff]
      %v564 = vld [vmem:[#allocation2 + $0x8] sm:$0xff]
      %v565 = vld [vmem:[#allocation2 + $0x10] sm:$0xff]
      %v566 = vld [vmem:[#allocation2 + $0x18] sm:$0xff]
      %v567 = vld [vmem:[#allocation2 + $0x20] sm:$0xff]
      %v568 = vld [vmem:[#allocation2 + $0x28] sm:$0xff]
      %v569 = vld [vmem:[%s4] sm:$0x3]
      %v571 = vlaneseq
      %v572 = vshrl.u32 %v571, 7
      %v573 = vsub.s32 0, %v572
      %v574 = vrot.slane %v569, %v573
      %v575 = vlaneseq
      %v576 = vshrl.u32 %v575, 7
      %v577 = vsub.s32 1, %v576
      %v578 = vrot.slane %v569, %v577
      %v581 = vadd.f32 %v563, %v574
      %v582 = vadd.f32 %v564, %v578
      %v583 = vadd.f32 %v565, %v574
      %v584 = vadd.f32 %v566, %v578
      %v585 = vadd.f32 %v567, %v574
      %v586 = vadd.f32 %v568, %v578
      %v587 = vmul.f32 %v581, 0.5
      %v588 = vmul.f32 %v582, 0.5
      %v589 = vmul.f32 %v583, 0.5
      %v590 = vmul.f32 %v584, 0.5
      %v591 = vmul.f32 %v585, 0.5
      %v592 = vmul.f32 %v586, 0.5
      %v593 = vmul.f32 %v581, 0.70710677
      %v594 = vmul.f32 %v582, 0.70710677
      %v595 = vmul.f32 %v583, 0.70710677
      %v596 = vmul.f32 %v584, 0.70710677
      %v597 = vmul.f32 %v585, 0.70710677
      %v598 = vmul.f32 %v586, 0.70710677
      %v599 = verf.f32.pop %v593
      %v600 = verf.f32.pop %v594
      %v601 = verf.f32.pop %v595
      %v602 = verf.f32.pop %v596
      %v603 = verf.f32.pop %v597
      %v604 = verf.f32.pop %v598
      %v605 = vadd.f32 %v599, 1.0
      %v606 = vadd.f32 %v600, 1.0
      %v607 = vadd.f32 %v601, 1.0
      %v608 = vadd.f32 %v602, 1.0
      %v609 = vadd.f32 %v603, 1.0
      %v610 = vadd.f32 %v604, 1.0
      %v611 = vmul.f32 %v587, %v605
      %v612 = vmul.f32 %v588, %v606
      %v613 = vmul.f32 %v589, %v607
      %v614 = vmul.f32 %v590, %v608
      %v615 = vmul.f32 %v591, %v609
      %v616 = vmul.f32 %v592, %v610
      %v617 = vpack.c.bf16 %v613, %v611
      %v618 = vpack.c.bf16 %v614, %v612
      %v619 = vpack.c.bf16 %v615, %v615
      %v620 = vpack.c.bf16 %v616, %v616
      %v621 = vld [vmem:[#allocation9] sm:$0xf]
      %v622 = vld [vmem:[#allocation9 + $0x4] sm:$0xf]
      %v623 = vld [vmem:[#allocation9 + $0x8] sm:$0xf]
      %v624 = vld [vmem:[#allocation9 + $0xc] sm:$0xf]
      %v625 = vld [vmem:[#allocation9 + $0x10] sm:$0xf]
      %v626 = vld [vmem:[#allocation9 + $0x14] sm:$0xf]
      %v627 = vld [vmem:[#allocation9 + $0x18] sm:$0xf]
      %v628 = vld [vmem:[#allocation9 + $0x1c] sm:$0xf]
      %v629 = vld [vmem:[#allocation9 + $0x20] sm:$0xf]
      %v630 = vld [vmem:[#allocation9 + $0x24] sm:$0xf]
      %v631 = vld [vmem:[#allocation9 + $0x28] sm:$0xf]
      %v632 = vld [vmem:[#allocation9 + $0x2c] sm:$0xf]
      %v633 = vld [vmem:[#allocation9 + $0x30] sm:$0xf]
      %v634 = vld [vmem:[#allocation9 + $0x34] sm:$0xf]
      %v635 = vld [vmem:[#allocation9 + $0x38] sm:$0xf]
      %v636 = vld [vmem:[#allocation9 + $0x3c] sm:$0xf]
      %v637 = vld [vmem:[#allocation9 + $0x40] sm:$0xf]
      %v638 = vld [vmem:[#allocation9 + $0x44] sm:$0xf]
      %v639 = vld [vmem:[#allocation9 + $0x48] sm:$0xf]
      %v640 = vld [vmem:[#allocation9 + $0x4c] sm:$0xf]
      %v641 = vld [vmem:[#allocation9 + $0x50] sm:$0xf]
      %v642 = vld [vmem:[#allocation9 + $0x54] sm:$0xf]
      %v643 = vld [vmem:[#allocation9 + $0x58] sm:$0xf]
      %v644 = vld [vmem:[#allocation9 + $0x5c] sm:$0xf]
      %v645 = vld [vmem:[#allocation9 + $0x60] sm:$0xf]
      %v646 = vld [vmem:[#allocation9 + $0x64] sm:$0xf]
      %v647 = vld [vmem:[#allocation9 + $0x68] sm:$0xf]
      %v648 = vld [vmem:[#allocation9 + $0x6c] sm:$0xf]
      %v649 = vld [vmem:[#allocation9 + $0x70] sm:$0xf]
      %v650 = vld [vmem:[#allocation9 + $0x74] sm:$0xf]
      %v651 = vld [vmem:[#allocation9 + $0x78] sm:$0xf]
      %v652 = vld [vmem:[#allocation9 + $0x7c] sm:$0xf]
      %v653 = vld [vmem:[%s6] sm:$0x1]
      %v655 = vlaneseq
      %v656 = vshrl.u32 %v655, 7
      %v657 = vsub.s32 0, %v656
      %v658 = vrot.slane %v653, %v657
      %v692 = vunpack.c.l.b16 %v621
      %v693 = vunpack.c.l.b16 %v622
      %v694 = vunpack.c.l.b16 %v623
      %v695 = vunpack.c.l.b16 %v624
      %v696 = vunpack.c.l.b16 %v625
      %v697 = vunpack.c.l.b16 %v626
      %v698 = vunpack.c.l.b16 %v627
      %v699 = vunpack.c.l.b16 %v628
      %v700 = vunpack.c.l.b16 %v629
      %v701 = vunpack.c.l.b16 %v630
      %v702 = vunpack.c.l.b16 %v631
      %v703 = vunpack.c.l.b16 %v632
      %v704 = vunpack.c.l.b16 %v633
      %v705 = vunpack.c.l.b16 %v634
      %v706 = vunpack.c.l.b16 %v635
      %v707 = vunpack.c.l.b16 %v636
      %v708 = vunpack.c.l.b16 %v637
      %v709 = vunpack.c.l.b16 %v638
      %v710 = vunpack.c.l.b16 %v639
      %v711 = vunpack.c.l.b16 %v640
      %v712 = vunpack.c.l.b16 %v641
      %v713 = vunpack.c.l.b16 %v642
      %v714 = vunpack.c.l.b16 %v643
      %v715 = vunpack.c.l.b16 %v644
      %v716 = vunpack.c.l.b16 %v645
      %v717 = vunpack.c.l.b16 %v646
      %v718 = vunpack.c.l.b16 %v647
      %v719 = vunpack.c.l.b16 %v648
      %v720 = vunpack.c.l.b16 %v649
      %v721 = vunpack.c.l.b16 %v650
      %v722 = vunpack.c.l.b16 %v651
      %v723 = vunpack.c.l.b16 %v652
      %v724 = vpack.c.b16 %v693, %v692
      %v725 = vpack.c.b16 %v695, %v694
      %v726 = vpack.c.b16 %v697, %v696
      %v727 = vpack.c.b16 %v699, %v698
      %v728 = vpack.c.b16 %v701, %v700
      %v729 = vpack.c.b16 %v703, %v702
      %v730 = vpack.c.b16 %v705, %v704
      %v731 = vpack.c.b16 %v707, %v706
      %v732 = vpack.c.b16 %v709, %v708
      %v733 = vpack.c.b16 %v711, %v710
      %v734 = vpack.c.b16 %v713, %v712
      %v735 = vpack.c.b16 %v715, %v714
      %v736 = vpack.c.b16 %v717, %v716
      %v737 = vpack.c.b16 %v719, %v718
      %v738 = vpack.c.b16 %v721, %v720
      %v739 = vpack.c.b16 %v723, %v722
      %756 = vmatprep.subr.bf16.mxu0 0
      %757 = vmatpush1.bf16.msra.mxu0 %v731
      %758 = vmatprep.subr.bf16.mxu0 0
      %759 = vmatpush1.bf16.msra.mxu0 %v730
      %760 = vmatprep.subr.bf16.mxu0 0
      %761 = vmatpush1.bf16.msra.mxu0 %v729
      %762 = vmatprep.subr.bf16.mxu0 0
      %763 = vmatpush1.bf16.msra.mxu0 %v728
      %764 = vmatprep.subr.bf16.mxu0 0
      %765 = vmatpush1.bf16.msra.mxu0 %v727
      %766 = vmatprep.subr.bf16.mxu0 0
      %767 = vmatpush1.bf16.msra.mxu0 %v726
      %768 = vmatprep.subr.bf16.mxu0 0
      %769 = vmatpush1.bf16.msra.mxu0 %v725
      %770 = vmatprep.subr.bf16.mxu0 0
      %771 = vmatpush1.bf16.msra.mxu0 %v724
      %772 = vmatprep.subr.bf16.mxu0 0
      %773 = vmatpush2.bf16.msra.mxu0 %v739
      %774 = vmatprep.subr.bf16.mxu0 0
      %775 = vmatpush2.bf16.msra.mxu0 %v738
      %776 = vmatprep.subr.bf16.mxu0 0
      %777 = vmatpush2.bf16.msra.mxu0 %v737
      %778 = vmatprep.subr.bf16.mxu0 0
      %779 = vmatpush2.bf16.msra.mxu0 %v736
      %780 = vmatprep.subr.bf16.mxu0 0
      %781 = vmatpush2.bf16.msra.mxu0 %v735
      %782 = vmatprep.subr.bf16.mxu0 0
      %783 = vmatpush2.bf16.msra.mxu0 %v734
      %784 = vmatprep.subr.bf16.mxu0 0
      %785 = vmatpush2.bf16.msra.mxu0 %v733
      %786 = vmatprep.subr.bf16.mxu0 0
      %787 = vmatpush2.bf16.msra.mxu0 %v732
      %788 = vmatprep.mubr.bf16.mxu0 %v618
      %789 = vmatmul.mubr.bf16.gmra.mxu0 %v617
      %v790 = vpop.f32.mrf.mxu0
      %v791 = vadd.f32 %v658, %v790
      %v792 = vpop.f32.mrf.mxu0
      %v793 = vpop.f32.mrf.mxu0
      %v794 = vadd.f32 %v658, %v793
      %v795 = vpop.f32.mrf.mxu0
      %796 = vmatprep.mubr.bf16.mxu0 %v620
      %797 = vmatmul.mubr.bf16.gmra.mxu0 %v619
      %v798 = vpop.f32.mrf.mxu0
      %v799 = vadd.f32 %v658, %v798
      %v800 = vpop.f32.mrf.mxu0
      %v801 = vpop.f32.mrf.mxu0
      %v802 = vpop.f32.mrf.mxu0
      %803 = vdwg.mxu0
      %804 = vst [vmem:[#allocation11] sm:$0xff] %v791
      %805 = vst [vmem:[#allocation11 + $0x8] sm:$0xff] %v794
      %806 = vst [vmem:[#allocation11 + $0x10] sm:$0xff] %v799
    $region53: #{tpu_custom_call.1} parent=1 // pred_fallthru
      _
    // Predicated region
    $region54: #{tpu_custom_call.1} parent=1 // pred_check
      _
    $region55: #{tpu_custom_call.1} parent=1 // pred_check_branch
      %808 = sbr.rel (0) target = $region57
    $region56: #{tpu_custom_call.1} parent=1 // pred_region
      %s810 = ssub.s32 384, 384
      %811 = vsyncadd [#allocation5], %s810
      %s812 = sshll.u32 [#allocation11], 4
      %s813 = int_to_ptr.vmem [resolvable:$true] %s812
      %818 = dma.vmem_to_hbm [thread:$0]  %s813, 384, %s7, [#allocation5], 128, 128, 8
    $region57: #{tpu_custom_call.1} parent=1 // pred_fallthru
      _
    // Predicated region
    $region58: #{tpu_custom_call.1} parent=1 // pred_check
      _
    $region59: #{tpu_custom_call.1} parent=1 // pred_check_branch
      %820 = sbr.rel (0) target = $region61
    $region60: #{tpu_custom_call.1} parent=1 // pred_region
      %821 = dma.done [#allocation5], 384
    $region61: #{tpu_custom_call.1} parent=1 // pred_fallthru
      _
    %822 = vsyncpa [#allocation4], 1
    %823 = vsyncpa [#allocation7], 1
    %824 = vsyncpa [#allocation10], 1
    %825 = vsyncpa [#allocation5], 1

// kernel: tpu_custom_call.1
$region0: #{tpu_custom_call.1}
  #allocation0 [shape = 'u32[]', space=smem, size = 0x4, offset = 0x4, fixed_abs, tag = 'smem constant byte address 0x4 - core index']
  #allocation1 [shape = 'u32[144,128]{1,0:T(1,128)}', space=vmem, size = 0x12000, scoped, tag = 'internal scratch']
  #allocation2 [shape = 'f32[24,256]{1,0:T(8,128)}', space=vmem, size = 0x6000, scoped, tag = 'scratch operand']
  %s0 = inlined_call_operand.hbm [shape: bf16[24,128], index: 0, kind: input, shape index: {}]
  %s1 = inlined_call_operand.hbm [shape: bf16[128,256], index: 1, kind: input, shape index: {}]
  %s2 = inlined_call_operand.vmem [shape: f32[1,256], index: 2, kind: input, shape index: {}]
  %s3 = inlined_call_operand.hbm [shape: bf16[256,256], index: 3, kind: input, shape index: {}]
  %s4 = inlined_call_operand.vmem [shape: f32[1,256], index: 4, kind: input, shape index: {}]
  %s5 = inlined_call_operand.hbm [shape: bf16[256,128], index: 5, kind: input, shape index: {}]
  %s6 = inlined_call_operand.vmem [shape: f32[1,128], index: 6, kind: input, shape index: {}]
  %s7 = inlined_call_operand.hbm [shape: f32[24,128], index: 7, kind: output, shape index: {}]
  %s8 = sld [smem:[#allocation0]]
  $region62: #{tpu_custom_call.1} parent=0
    _
  %s10 = ssub.s32 1, %s8
  %s11 = scalar_select 0, %s10, %s8
  $region1: #{tpu_custom_call.1} parent=0
    #allocation3 [shape = 'u8[6144]{0}', space=vmem, size = 0x1800, scoped, tag = 'input window, operand 0, single buffered']
    #allocation4 [shape = 's32[1]{0}', space=sflag, size = 0x4, scoped, tag = 'scoped memory for tpu_custom_call.1']
    #allocation5 [shape = 's32[1]{0}', space=sflag, size = 0x4, scoped, tag = 'scoped memory for tpu_custom_call.1']
    #allocation6 [shape = 'u8[65536]{0}', space=vmem, size = 0x10000, scoped, tag = 'input window, operand 1, single buffered']
    #allocation7 [shape = 's32[1]{0}', space=sflag, size = 0x4, scoped, tag = 'scoped memory for tpu_custom_call.1']
    #allocation8 [shape = 'u8[131072]{0}', space=vmem, size = 0x20000, scoped, tag = 'input window, operand 3, single buffered']
    #allocation9 [shape = 'u8[65536]{0}', space=vmem, size = 0x10000, scoped, tag = 'input window, operand 5, single buffered']
    #allocation10 [shape = 's32[1]{0}', space=sflag, size = 0x4, scoped, tag = 'scoped memory for tpu_custom_call.1']
    #allocation11 [shape = 'u8[12288]{0}', space=vmem, size = 0x3000, scoped, tag = 'output window, operand 0, single buffered']
    %12 = vsyncpa [#allocation4], 0
    %13 = vsyncpa [#allocation7], 0
    %14 = vsyncpa [#allocation10], 0
    %15 = vsyncpa [#allocation5], 0
    // Predicated region
    $region2: #{tpu_custom_call.1} parent=1 // pred_check
      _
    $region3: #{tpu_custom_call.1} parent=1 // pred_check_branch
      %17 = sbr.rel (0) target = $region5
    $region4: #{tpu_custom_call.1} parent=1 // pred_region
      %s19 = ssub.s32 192, 192
      %20 = vsyncadd [#allocation4], %s19
      %s21 = sshll.u32 [#allocation3], 4
      %s22 = int_to_ptr.vmem [resolvable:$true] %s21
      %27 = dma.hbm_to_vmem [thread:$0]  %s0, 192, %s22, [#allocation4], 64, 64, 4
    $region5: #{tpu_custom_call.1} parent=1 // pred_fallthru
      _
    // Predicated region
    $region6: #{tpu_custom_call.1} parent=1 // pred_check
      _
    $region7: #{tpu_custom_call.1} parent=1 // pred_check_branch
      %29 = sbr.rel (0) target = $region9
    $region8: #{tpu_custom_call.1} parent=1 // pred_region
      %s31 = ssub.s32 2048, 2048
      %32 = vsyncadd [#allocation7], %s31
      %s33 = sshll.u32 [#allocation6], 4
      %s34 = int_to_ptr.vmem [resolvable:$true] %s33
      %39 = dma.hbm_to_vmem [thread:$0]  %s1, 2048, %s34, [#allocation7], 128, 128, 8
    $region9: #{tpu_custom_call.1} parent=1 // pred_fallthru
      _
    // Predicated region
    $region10: #{tpu_custom_call.1} parent=1 // pred_check
      _
    $region11: #{tpu_custom_call.1} parent=1 // pred_check_branch
      %41 = sbr.rel (0) target = $region13
    $region12: #{tpu_custom_call.1} parent=1 // pred_region
      _
    $region13: #{tpu_custom_call.1} parent=1 // pred_fallthru
      _
    // Predicated region
    $region14: #{tpu_custom_call.1} parent=1 // pred_check
      _
    $region15: #{tpu_custom_call.1} parent=1 // pred_check_branch
      %43 = sbr.rel (0) target = $region17
    $region16: #{tpu_custom_call.1} parent=1 // pred_region
      %s45 = ssub.s32 4096, 4096
      %46 = vsyncadd [#allocation7], %s45
      %s47 = sshll.u32 [#allocation8], 4
      %s48 = int_to_ptr.vmem [resolvable:$true] %s47
      %53 = dma.hbm_to_vmem [thread:$0]  %s3, 4096, %s48, [#allocation7], 128, 128, 8
    $region17: #{tpu_custom_call.1} parent=1 // pred_fallthru
      _
    // Predicated region
    $region18: #{tpu_custom_call.1} parent=1 // pred_check
      _
    $region19: #{tpu_custom_call.1} parent=1 // pred_check_branch
      %55 = sbr.rel (0) target = $region21
    $region20: #{tpu_custom_call.1} parent=1 // pred_region
      _
    $region21: #{tpu_custom_call.1} parent=1 // pred_fallthru
      _
    // Predicated region
    $region22: #{tpu_custom_call.1} parent=1 // pred_check
      _
    $region23: #{tpu_custom_call.1} parent=1 // pred_check_branch
      %57 = sbr.rel (0) target = $region25
    $region24: #{tpu_custom_call.1} parent=1 // pred_region
      %s59 = ssub.s32 2048, 2048
      %60 = vsyncadd [#allocation10], %s59
      %s61 = sshll.u32 [#allocation9], 4
      %s62 = int_to_ptr.vmem [resolvable:$true] %s61
      %67 = dma.hbm_to_vmem [thread:$0]  %s5, 2048, %s62, [#allocation10], 64, 64, 4
    $region25: #{tpu_custom_call.1} parent=1 // pred_fallthru
      _
    // Predicated region
    $region26: #{tpu_custom_call.1} parent=1 // pred_check
      _
    $region27: #{tpu_custom_call.1} parent=1 // pred_check_branch
      %69 = sbr.rel (0) target = $region29
    $region28: #{tpu_custom_call.1} parent=1 // pred_region
      _
    $region29: #{tpu_custom_call.1} parent=1 // pred_fallthru
      _
    // Predicated region
    $region30: #{tpu_custom_call.1} parent=1 // pred_check
      _
    $region31: #{tpu_custom_call.1} parent=1 // pred_check_branch
      %71 = sbr.rel (0) target = $region33
    $region32: #{tpu_custom_call.1} parent=1 // pred_region
      %72 = dma.done [#allocation4], 192
    $region33: #{tpu_custom_call.1} parent=1 // pred_fallthru
      _
    // Predicated region
    $region34: #{tpu_custom_call.1} parent=1 // pred_check
      _
    $region35: #{tpu_custom_call.1} parent=1 // pred_check_branch
      %74 = sbr.rel (0) target = $region37
    $region36: #{tpu_custom_call.1} parent=1 // pred_region
      %75 = dma.done [#allocation7], 2048
    $region37: #{tpu_custom_call.1} parent=1 // pred_fallthru
      _
    // Predicated region
    $region38: #{tpu_custom_call.1} parent=1 // pred_check
      _
    $region39: #{tpu_custom_call.1} parent=1 // pred_check_branch
      %77 = sbr.rel (0) target = $region41
    $region40: #{tpu_custom_call.1} parent=1 // pred_region
      %78 = dma.done [#allocation7], 4096
    $region41: #{tpu_custom_call.1} parent=1 // pred_fallthru
      _
    // Predicated region
    $region42: #{tpu_custom_call.1} parent=1 // pred_check
      _
    $region43: #{tpu_custom_call.1} parent=1 // pred_check_branch
      %80 = sbr.rel (0) target = $region45
    $region44: #{tpu_custom_call.1} parent=1 // pred_region
      %81 = dma.done [#allocation10], 2048
    $region45: #{tpu_custom_call.1} parent=1 // pred_fallthru
      _
    %p83 = scmp.eq.s32.totalorder 0, 0
    // Predicated region
    $region46: #{tpu_custom_call.1} parent=1 // pred_check
      %p84 = pneg %p83
    $region47: #{tpu_custom_call.1} parent=1 // pred_check_branch
      %86 = sbr.rel (%p84) target = $region49
    $region48: #{tpu_custom_call.1} parent=1 // pred_region
      %87 = vst [vmem:[#allocation2] sm:$0xff] 0.0
      %88 = vst [vmem:[#allocation2 + $0x8] sm:$0xff] 0.0
      %89 = vst [vmem:[#allocation2 + $0x10] sm:$0xff] 0.0
      %90 = vst [vmem:[#allocation2 + $0x18] sm:$0xff] 0.0
      %91 = vst [vmem:[#allocation2 + $0x20] sm:$0xff] 0.0
      %92 = vst [vmem:[#allocation2 + $0x28] sm:$0xff] 0.0
    $region49: #{tpu_custom_call.1} parent=1 // pred_fallthru
      _
    %v93 = vld [vmem:[#allocation3] sm:$0xf]
    %v94 = vld [vmem:[#allocation3 + $0x4] sm:$0xf]
    %v95 = vld [vmem:[#allocation3 + $0x8] sm:$0xf]
    %v96 = vld [vmem:[#allocation6] sm:$0xff]
    %v97 = vld [vmem:[#allocation6 + $0x8] sm:$0xff]
    %v98 = vld [vmem:[#allocation6 + $0x10] sm:$0xff]
    %v99 = vld [vmem:[#allocation6 + $0x18] sm:$0xff]
    %v100 = vld [vmem:[#allocation6 + $0x20] sm:$0xff]
    %v101 = vld [vmem:[#allocation6 + $0x28] sm:$0xff]
    %v102 = vld [vmem:[#allocation6 + $0x30] sm:$0xff]
    %v103 = vld [vmem:[#allocation6 + $0x38] sm:$0xff]
    %v104 = vld [vmem:[#allocation6 + $0x40] sm:$0xff]
    %v105 = vld [vmem:[#allocation6 + $0x48] sm:$0xff]
    %v106 = vld [vmem:[#allocation6 + $0x50] sm:$0xff]
    %v107 = vld [vmem:[#allocation6 + $0x58] sm:$0xff]
    %v108 = vld [vmem:[#allocation6 + $0x60] sm:$0xff]
    %v109 = vld [vmem:[#allocation6 + $0x68] sm:$0xff]
    %v110 = vld [vmem:[#allocation6 + $0x70] sm:$0xff]
    %v111 = vld [vmem:[#allocation6 + $0x78] sm:$0xff]
    %v112 = vld [vmem:[%s2] sm:$0x3]
    %v114 = vlaneseq
    %v115 = vshrl.u32 %v114, 7
    %v116 = vsub.s32 0, %v115
    %v117 = vrot.slane %v112, %v116
    %v118 = vlaneseq
    %v119 = vshrl.u32 %v118, 7
    %v120 = vsub.s32 1, %v119
    %v121 = vrot.slane %v112, %v120
    %v127 = vunpack.c.l.b16 %v93
    %v128 = vunpack.c.l.b16 %v94
    %v129 = vunpack.c.l.b16 %v95
    %v130 = vpack.c.b16 %v128, %v127
    %v131 = vpack.c.b16 %v129, %v129
    %v150 = vunpack.c.l.b16 %v96
    %v151 = vunpack.c.h.b16 %v96
    %v152 = vunpack.c.l.b16 %v97
    %v153 = vunpack.c.h.b16 %v97
    %v154 = vunpack.c.l.b16 %v98
    %v155 = vunpack.c.h.b16 %v98
    %v156 = vunpack.c.l.b16 %v99
    %v157 = vunpack.c.h.b16 %v99
    %v158 = vunpack.c.l.b16 %v100
    %v159 = vunpack.c.h.b16 %v100
    %v160 = vunpack.c.l.b16 %v101
    %v161 = vunpack.c.h.b16 %v101
    %v162 = vunpack.c.l.b16 %v102
    %v163 = vunpack.c.h.b16 %v102
    %v164 = vunpack.c.l.b16 %v103
    %v165 = vunpack.c.h.b16 %v103
    %v166 = vunpack.c.l.b16 %v104
    %v167 = vunpack.c.h.b16 %v104
    %v168 = vunpack.c.l.b16 %v105
    %v169 = vunpack.c.h.b16 %v105
    %v170 = vunpack.c.l.b16 %v106
    %v171 = vunpack.c.h.b16 %v106
    %v172 = vunpack.c.l.b16 %v107
    %v173 = vunpack.c.h.b16 %v107
    %v174 = vunpack.c.l.b16 %v108
    %v175 = vunpack.c.h.b16 %v108
    %v176 = vunpack.c.l.b16 %v109
    %v177 = vunpack.c.h.b16 %v109
    %v178 = vunpack.c.l.b16 %v110
    %v179 = vunpack.c.h.b16 %v110
    %v180 = vunpack.c.l.b16 %v111
    %v181 = vunpack.c.h.b16 %v111
    %v182 = vpack.c.b16 %v152, %v150
    %v183 = vpack.c.b16 %v153, %v151
    %v184 = vpack.c.b16 %v156, %v154
    %v185 = vpack.c.b16 %v157, %v155
    %v186 = vpack.c.b16 %v160, %v158
    %v187 = vpack.c.b16 %v161, %v159
    %v188 = vpack.c.b16 %v164, %v162
    %v189 = vpack.c.b16 %v165, %v163
    %v190 = vpack.c.b16 %v168, %v166
    %v191 = vpack.c.b16 %v169, %v167
    %v192 = vpack.c.b16 %v172, %v170
    %v193 = vpack.c.b16 %v173, %v171
    %v194 = vpack.c.b16 %v176, %v174
    %v195 = vpack.c.b16 %v177, %v175
    %v196 = vpack.c.b16 %v180, %v178
    %v197 = vpack.c.b16 %v181, %v179
    %214 = vmatprep.subr.bf16.mxu0 %v197
    %215 = vmatpush1.bf16.msra.mxu0 %v196
    %216 = vmatprep.subr.bf16.mxu0 %v195
    %217 = vmatpush1.bf16.msra.mxu0 %v194
    %218 = vmatprep.subr.bf16.mxu0 %v193
    %219 = vmatpush1.bf16.msra.mxu0 %v192
    %220 = vmatprep.subr.bf16.mxu0 %v191
    %221 = vmatpush1.bf16.msra.mxu0 %v190
    %222 = vmatprep.subr.bf16.mxu0 %v189
    %223 = vmatpush1.bf16.msra.mxu0 %v188
    %224 = vmatprep.subr.bf16.mxu0 %v187
    %225 = vmatpush1.bf16.msra.mxu0 %v186
    %226 = vmatprep.subr.bf16.mxu0 %v185
    %227 = vmatpush1.bf16.msra.mxu0 %v184
    %228 = vmatprep.subr.bf16.mxu0 %v183
    %229 = vmatpush1.bf16.msra.mxu0 %v182
    %230 = vmatprep.subr.bf16.mxu0 0
    %231 = vmatpush2.bf16.msra.mxu0 0
    %232 = vmatprep.subr.bf16.mxu0 0
    %233 = vmatpush2.bf16.msra.mxu0 0
    %234 = vmatprep.subr.bf16.mxu0 0
    %235 = vmatpush2.bf16.msra.mxu0 0
    %236 = vmatprep.subr.bf16.mxu0 0
    %237 = vmatpush2.bf16.msra.mxu0 0
    %238 = vmatprep.subr.bf16.mxu0 0
    %239 = vmatpush2.bf16.msra.mxu0 0
    %240 = vmatprep.subr.bf16.mxu0 0
    %241 = vmatpush2.bf16.msra.mxu0 0
    %242 = vmatprep.subr.bf16.mxu0 0
    %243 = vmatpush2.bf16.msra.mxu0 0
    %244 = vmatprep.subr.bf16.mxu0 0
    %245 = vmatpush2.bf16.msra.mxu0 0
    %246 = vmatprep.mubr.bf16.mxu0 0
    %247 = vmatmul.mubr.bf16.gmra.mxu0 %v130
    %v248 = vpop.f32.mrf.mxu0
    %v249 = vadd.f32 %v117, %v248
    %v250 = vpop.f32.mrf.mxu0
    %v251 = vadd.f32 %v121, %v250
    %v252 = vpop.f32.mrf.mxu0
    %v253 = vadd.f32 %v117, %v252
    %v254 = vpop.f32.mrf.mxu0
    %v255 = vadd.f32 %v121, %v254
    %256 = vmatprep.mubr.bf16.mxu0 0
    %257 = vmatmul.mubr.bf16.gmra.mxu0 %v131
    %v258 = vpop.f32.mrf.mxu0
    %v259 = vadd.f32 %v117, %v258
    %v260 = vpop.f32.mrf.mxu0
    %v261 = vadd.f32 %v121, %v260
    %v262 = vpop.f32.mrf.mxu0
    %v263 = vpop.f32.mrf.mxu0
    %264 = vdwg.mxu0
    %v265 = vmul.f32 %v249, 0.5
    %v266 = vmul.f32 %v251, 0.5
    %v267 = vmul.f32 %v253, 0.5
    %v268 = vmul.f32 %v255, 0.5
    %v269 = vmul.f32 %v259, 0.5
    %v270 = vmul.f32 %v261, 0.5
    %v271 = vmul.f32 %v249, 0.70710677
    %v272 = vmul.f32 %v251, 0.70710677
    %v273 = vmul.f32 %v253, 0.70710677
    %v274 = vmul.f32 %v255, 0.70710677
    %v275 = vmul.f32 %v259, 0.70710677
    %v276 = vmul.f32 %v261, 0.70710677
    %v277 = verf.f32.pop %v271
    %v278 = verf.f32.pop %v272
    %v279 = verf.f32.pop %v273
    %v280 = verf.f32.pop %v274
    %v281 = verf.f32.pop %v275
    %v282 = verf.f32.pop %v276
    %v283 = vadd.f32 %v277, 1.0
    %v284 = vadd.f32 %v278, 1.0
    %v285 = vadd.f32 %v279, 1.0
    %v286 = vadd.f32 %v280, 1.0
    %v287 = vadd.f32 %v281, 1.0
    %v288 = vadd.f32 %v282, 1.0
    %v289 = vmul.f32 %v265, %v283
    %v290 = vmul.f32 %v266, %v284
    %v291 = vmul.f32 %v267, %v285
    %v292 = vmul.f32 %v268, %v286
    %v293 = vmul.f32 %v269, %v287
    %v294 = vmul.f32 %v270, %v288
    %v295 = vld [vmem:[#allocation2] sm:$0xff]
    %v296 = vld [vmem:[#allocation2 + $0x8] sm:$0xff]
    %v297 = vld [vmem:[#allocation2 + $0x10] sm:$0xff]
    %v298 = vld [vmem:[#allocation2 + $0x18] sm:$0xff]
    %v299 = vld [vmem:[#allocation2 + $0x20] sm:$0xff]
    %v300 = vld [vmem:[#allocation2 + $0x28] sm:$0xff]
    %v301 = vpack.c.bf16 %v291, %v289
    %v302 = vpack.c.bf16 %v292, %v290
    %v303 = vpack.c.bf16 %v293, %v293
    %v304 = vpack.c.bf16 %v294, %v294
    %v305 = vld [vmem:[#allocation8] sm:$0xff]
    %v306 = vld [vmem:[#allocation8 + $0x8] sm:$0xff]
    %v307 = vld [vmem:[#allocation8 + $0x10] sm:$0xff]
    %v308 = vld [vmem:[#allocation8 + $0x18] sm:$0xff]
    %v309 = vld [vmem:[#allocation8 + $0x20] sm:$0xff]
    %v310 = vld [vmem:[#allocation8 + $0x28] sm:$0xff]
    %v311 = vld [vmem:[#allocation8 + $0x30] sm:$0xff]
    %v312 = vld [vmem:[#allocation8 + $0x38] sm:$0xff]
    %v313 = vld [vmem:[#allocation8 + $0x40] sm:$0xff]
    %v314 = vld [vmem:[#allocation8 + $0x48] sm:$0xff]
    %v315 = vld [vmem:[#allocation8 + $0x50] sm:$0xff]
    %v316 = vld [vmem:[#allocation8 + $0x58] sm:$0xff]
    %v317 = vld [vmem:[#allocation8 + $0x60] sm:$0xff]
    %v318 = vld [vmem:[#allocation8 + $0x68] sm:$0xff]
    %v319 = vld [vmem:[#allocation8 + $0x70] sm:$0xff]
    %v320 = vld [vmem:[#allocation8 + $0x78] sm:$0xff]
    %v321 = vld [vmem:[#allocation8 + $0x80] sm:$0xff]
    %v322 = vld [vmem:[#allocation8 + $0x88] sm:$0xff]
    %v323 = vld [vmem:[#allocation8 + $0x90] sm:$0xff]
    %v324 = vld [vmem:[#allocation8 + $0x98] sm:$0xff]
    %v325 = vld [vmem:[#allocation8 + $0xa0] sm:$0xff]
    %v326 = vld [vmem:[#allocation8 + $0xa8] sm:$0xff]
    %v327 = vld [vmem:[#allocation8 + $0xb0] sm:$0xff]
    %v328 = vld [vmem:[#allocation8 + $0xb8] sm:$0xff]
    %v329 = vld [vmem:[#allocation8 + $0xc0] sm:$0xff]
    %v330 = vld [vmem:[#allocation8 + $0xc8] sm:$0xff]
    %v331 = vld [vmem:[#allocation8 + $0xd0] sm:$0xff]
    %v332 = vld [vmem:[#allocation8 + $0xd8] sm:$0xff]
    %v333 = vld [vmem:[#allocation8 + $0xe0] sm:$0xff]
    %v334 = vld [vmem:[#allocation8 + $0xe8] sm:$0xff]
    %v335 = vld [vmem:[#allocation8 + $0xf0] sm:$0xff]
    %v336 = vld [vmem:[#allocation8 + $0xf8] sm:$0xff]
    %v369 = vunpack.c.l.b16 %v305
    %v370 = vunpack.c.h.b16 %v305
    %v371 = vunpack.c.l.b16 %v306
    %v372 = vunpack.c.h.b16 %v306
    %v373 = vunpack.c.l.b16 %v307
    %v374 = vunpack.c.h.b16 %v307
    %v375 = vunpack.c.l.b16 %v308
    %v376 = vunpack.c.h.b16 %v308
    %v377 = vunpack.c.l.b16 %v309
    %v378 = vunpack.c.h.b16 %v309
    %v379 = vunpack.c.l.b16 %v310
    %v380 = vunpack.c.h.b16 %v310
    %v381 = vunpack.c.l.b16 %v311
    %v382 = vunpack.c.h.b16 %v311
    %v383 = vunpack.c.l.b16 %v312
    %v384 = vunpack.c.h.b16 %v312
    %v385 = vunpack.c.l.b16 %v313
    %v386 = vunpack.c.h.b16 %v313
    %v387 = vunpack.c.l.b16 %v314
    %v388 = vunpack.c.h.b16 %v314
    %v389 = vunpack.c.l.b16 %v315
    %v390 = vunpack.c.h.b16 %v315
    %v391 = vunpack.c.l.b16 %v316
    %v392 = vunpack.c.h.b16 %v316
    %v393 = vunpack.c.l.b16 %v317
    %v394 = vunpack.c.h.b16 %v317
    %v395 = vunpack.c.l.b16 %v318
    %v396 = vunpack.c.h.b16 %v318
    %v397 = vunpack.c.l.b16 %v319
    %v398 = vunpack.c.h.b16 %v319
    %v399 = vunpack.c.l.b16 %v320
    %v400 = vunpack.c.h.b16 %v320
    %v401 = vunpack.c.l.b16 %v321
    %v402 = vunpack.c.h.b16 %v321
    %v403 = vunpack.c.l.b16 %v322
    %v404 = vunpack.c.h.b16 %v322
    %v405 = vunpack.c.l.b16 %v323
    %v406 = vunpack.c.h.b16 %v323
    %v407 = vunpack.c.l.b16 %v324
    %v408 = vunpack.c.h.b16 %v324
    %v409 = vunpack.c.l.b16 %v325
    %v410 = vunpack.c.h.b16 %v325
    %v411 = vunpack.c.l.b16 %v326
    %v412 = vunpack.c.h.b16 %v326
    %v413 = vunpack.c.l.b16 %v327
    %v414 = vunpack.c.h.b16 %v327
    %v415 = vunpack.c.l.b16 %v328
    %v416 = vunpack.c.h.b16 %v328
    %v417 = vunpack.c.l.b16 %v329
    %v418 = vunpack.c.h.b16 %v329
    %v419 = vunpack.c.l.b16 %v330
    %v420 = vunpack.c.h.b16 %v330
    %v421 = vunpack.c.l.b16 %v331
    %v422 = vunpack.c.h.b16 %v331
    %v423 = vunpack.c.l.b16 %v332
    %v424 = vunpack.c.h.b16 %v332
    %v425 = vunpack.c.l.b16 %v333
    %v426 = vunpack.c.h.b16 %v333
    %v427 = vunpack.c.l.b16 %v334
    %v428 = vunpack.c.h.b16 %v334
    %v429 = vunpack.c.l.b16 %v335
    %v430 = vunpack.c.h.b16 %v335
    %v431 = vunpack.c.l.b16 %v336
    %v432 = vunpack.c.h.b16 %v336
    %v433 = vpack.c.b16 %v371, %v369
    %v434 = vpack.c.b16 %v372, %v370
    %v435 = vpack.c.b16 %v375, %v373
    %v436 = vpack.c.b16 %v376, %v374
    %v437 = vpack.c.b16 %v379, %v377
    %v438 = vpack.c.b16 %v380, %v378
    %v439 = vpack.c.b16 %v383, %v381
    %v440 = vpack.c.b16 %v384, %v382
    %v441 = vpack.c.b16 %v387, %v385
    %v442 = vpack.c.b16 %v388, %v386
    %v443 = vpack.c.b16 %v391, %v389
    %v444 = vpack.c.b16 %v392, %v390
    %v445 = vpack.c.b16 %v395, %v393
    %v446 = vpack.c.b16 %v396, %v394
    %v447 = vpack.c.b16 %v399, %v397
    %v448 = vpack.c.b16 %v400, %v398
    %v449 = vpack.c.b16 %v403, %v401
    %v450 = vpack.c.b16 %v404, %v402
    %v451 = vpack.c.b16 %v407, %v405
    %v452 = vpack.c.b16 %v408, %v406
    %v453 = vpack.c.b16 %v411, %v409
    %v454 = vpack.c.b16 %v412, %v410
    %v455 = vpack.c.b16 %v415, %v413
    %v456 = vpack.c.b16 %v416, %v414
    %v457 = vpack.c.b16 %v419, %v417
    %v458 = vpack.c.b16 %v420, %v418
    %v459 = vpack.c.b16 %v423, %v421
    %v460 = vpack.c.b16 %v424, %v422
    %v461 = vpack.c.b16 %v427, %v425
    %v462 = vpack.c.b16 %v428, %v426
    %v463 = vpack.c.b16 %v431, %v429
    %v464 = vpack.c.b16 %v432, %v430
    %497 = vmatprep.subr.bf16.mxu0 %v448
    %498 = vmatpush1.bf16.msra.mxu0 %v447
    %499 = vmatprep.subr.bf16.mxu0 %v446
    %500 = vmatpush1.bf16.msra.mxu0 %v445
    %501 = vmatprep.subr.bf16.mxu0 %v444
    %502 = vmatpush1.bf16.msra.mxu0 %v443
    %503 = vmatprep.subr.bf16.mxu0 %v442
    %504 = vmatpush1.bf16.msra.mxu0 %v441
    %505 = vmatprep.subr.bf16.mxu0 %v440
    %506 = vmatpush1.bf16.msra.mxu0 %v439
    %507 = vmatprep.subr.bf16.mxu0 %v438
    %508 = vmatpush1.bf16.msra.mxu0 %v437
    %509 = vmatprep.subr.bf16.mxu0 %v436
    %510 = vmatpush1.bf16.msra.mxu0 %v435
    %511 = vmatprep.subr.bf16.mxu0 %v434
    %512 = vmatpush1.bf16.msra.mxu0 %v433
    %513 = vmatprep.subr.bf16.mxu0 %v464
    %514 = vmatpush2.bf16.msra.mxu0 %v463
    %515 = vmatprep.subr.bf16.mxu0 %v462
    %516 = vmatpush2.bf16.msra.mxu0 %v461
    %517 = vmatprep.subr.bf16.mxu0 %v460
    %518 = vmatpush2.bf16.msra.mxu0 %v459
    %519 = vmatprep.subr.bf16.mxu0 %v458
    %520 = vmatpush2.bf16.msra.mxu0 %v457
    %521 = vmatprep.subr.bf16.mxu0 %v456
    %522 = vmatpush2.bf16.msra.mxu0 %v455
    %523 = vmatprep.subr.bf16.mxu0 %v454
    %524 = vmatpush2.bf16.msra.mxu0 %v453
    %525 = vmatprep.subr.bf16.mxu0 %v452
    %526 = vmatpush2.bf16.msra.mxu0 %v451
    %527 = vmatprep.subr.bf16.mxu0 %v450
    %528 = vmatpush2.bf16.msra.mxu0 %v449
    %529 = vmatprep.mubr.bf16.mxu0 %v302
    %530 = vmatmul.mubr.bf16.gmra.mxu0 %v301
    %v531 = vpop.f32.mrf.mxu0
    %v532 = vadd.f32 0.0, %v531
    %v533 = vpop.f32.mrf.mxu0
    %v534 = vadd.f32 0.0, %v533
    %v535 = vpop.f32.mrf.mxu0
    %v536 = vadd.f32 0.0, %v535
    %v537 = vpop.f32.mrf.mxu0
    %v538 = vadd.f32 0.0, %v537
    %539 = vmatprep.mubr.bf16.mxu0 %v304
    %540 = vmatmul.mubr.bf16.gmra.mxu0 %v303
    %v541 = vpop.f32.mrf.mxu0
    %v542 = vadd.f32 0.0, %v541
    %v543 = vpop.f32.mrf.mxu0
    %v544 = vadd.f32 0.0, %v543
    %v545 = vpop.f32.mrf.mxu0
    %v546 = vpop.f32.mrf.mxu0
    %547 = vdwg.mxu0
    %v548 = vadd.f32 %v295, %v532
    %v549 = vadd.f32 %v296, %v534
    %v550 = vadd.f32 %v297, %v536
    %v551 = vadd.f32 %v298, %v538
    %v552 = vadd.f32 %v299, %v542
    %v553 = vadd.f32 %v300, %v544
    %554 = vst [vmem:[#allocation2] sm:$0xff] %v548
    %555 = vst [vmem:[#allocation2 + $0x8] sm:$0xff] %v549
    %556 = vst [vmem:[#allocation2 + $0x10] sm:$0xff] %v550
    %557 = vst [vmem:[#allocation2 + $0x18] sm:$0xff] %v551
    %558 = vst [vmem:[#allocation2 + $0x20] sm:$0xff] %v552
    %559 = vst [vmem:[#allocation2 + $0x28] sm:$0xff] %v553
    // Predicated region
    $region50: #{tpu_custom_call.1} parent=1 // pred_check
      %p560 = pneg %p83
    $region51: #{tpu_custom_call.1} parent=1 // pred_check_branch
      %562 = sbr.rel (%p560) target = $region53
    $region52: #{tpu_custom_call.1} parent=1 // pred_region
      %v563 = vld [vmem:[#allocation2] sm:$0xff]
      %v564 = vld [vmem:[#allocation2 + $0x8] sm:$0xff]
      %v565 = vld [vmem:[#allocation2 + $0x10] sm:$0xff]
      %v566 = vld [vmem:[#allocation2 + $0x18] sm:$0xff]
      %v567 = vld [vmem:[#allocation2 + $0x20] sm:$0xff]
      %v568 = vld [vmem:[#allocation2 + $0x28] sm:$0xff]
      %v569 = vld [vmem:[%s4] sm:$0x3]
      %v571 = vlaneseq
      %v572 = vshrl.u32 %v571, 7
      %v573 = vsub.s32 0, %v572
      %v574 = vrot.slane %v569, %v573
      %v575 = vlaneseq
      %v576 = vshrl.u32 %v575, 7
      %v577 = vsub.s32 1, %v576
      %v578 = vrot.slane %v569, %v577
      %v581 = vadd.f32 %v563, %v574
      %v582 = vadd.f32 %v564, %v578
      %v583 = vadd.f32 %v565, %v574
      %v584 = vadd.f32 %v566, %v578
      %v585 = vadd.f32 %v567, %v574
      %v586 = vadd.f32 %v568, %v578
      %v587 = vmul.f32 %v581, 0.5
      %v588 = vmul.f32 %v582, 0.5
      %v589 = vmul.f32 %v583, 0.5
      %v590 = vmul.f32 %v584, 0.5
      %v591 = vmul.f32 %v585, 0.5
      %v592 = vmul.f32 %v586, 0.5
      %v593 = vmul.f32 %v581, 0.70710677
      %v594 = vmul.f32 %v582, 0.70710677
      %v595 = vmul.f32 %v583, 0.70710677
      %v596 = vmul.f32 %v584, 0.70710677
      %v597 = vmul.f32 %v585, 0.70710677
      %v598 = vmul.f32 %v586, 0.70710677
      %v599 = verf.f32.pop %v593
      %v600 = verf.f32.pop %v594
      %v601 = verf.f32.pop %v595
      %v602 = verf.f32.pop %v596
      %v603 = verf.f32.pop %v597
      %v604 = verf.f32.pop %v598
      %v605 = vadd.f32 %v599, 1.0
      %v606 = vadd.f32 %v600, 1.0
      %v607 = vadd.f32 %v601, 1.0
      %v608 = vadd.f32 %v602, 1.0
      %v609 = vadd.f32 %v603, 1.0
      %v610 = vadd.f32 %v604, 1.0
      %v611 = vmul.f32 %v587, %v605
      %v612 = vmul.f32 %v588, %v606
      %v613 = vmul.f32 %v589, %v607
      %v614 = vmul.f32 %v590, %v608
      %v615 = vmul.f32 %v591, %v609
      %v616 = vmul.f32 %v592, %v610
      %v617 = vpack.c.bf16 %v613, %v611
      %v618 = vpack.c.bf16 %v614, %v612
      %v619 = vpack.c.bf16 %v615, %v615
      %v620 = vpack.c.bf16 %v616, %v616
      %v621 = vld [vmem:[#allocation9] sm:$0xf]
      %v622 = vld [vmem:[#allocation9 + $0x4] sm:$0xf]
      %v623 = vld [vmem:[#allocation9 + $0x8] sm:$0xf]
      %v624 = vld [vmem:[#allocation9 + $0xc] sm:$0xf]
      %v625 = vld [vmem:[#allocation9 + $0x10] sm:$0xf]
      %v626 = vld [vmem:[#allocation9 + $0x14] sm:$0xf]
      %v627 = vld [vmem:[#allocation9 + $0x18] sm:$0xf]
      %v628 = vld [vmem:[#allocation9 + $0x1c] sm:$0xf]
      %v629 = vld [vmem:[#allocation9 + $0x20] sm:$0xf]
      %v630 = vld [vmem:[#allocation9 + $0x24] sm:$0xf]
      %v631 = vld [vmem:[#allocation9 + $0x28] sm:$0xf]
      %v632 = vld [vmem:[#allocation9 + $0x2c] sm:$0xf]
      %v633 = vld [vmem:[#allocation9 + $0x30] sm:$0xf]
      %v634 = vld [vmem:[#allocation9 + $0x34] sm:$0xf]
      %v635 = vld [vmem:[#allocation9 + $0x38] sm:$0xf]
      %v636 = vld [vmem:[#allocation9 + $0x3c] sm:$0xf]
      %v637 = vld [vmem:[#allocation9 + $0x40] sm:$0xf]
      %v638 = vld [vmem:[#allocation9 + $0x44] sm:$0xf]
      %v639 = vld [vmem:[#allocation9 + $0x48] sm:$0xf]
      %v640 = vld [vmem:[#allocation9 + $0x4c] sm:$0xf]
      %v641 = vld [vmem:[#allocation9 + $0x50] sm:$0xf]
      %v642 = vld [vmem:[#allocation9 + $0x54] sm:$0xf]
      %v643 = vld [vmem:[#allocation9 + $0x58] sm:$0xf]
      %v644 = vld [vmem:[#allocation9 + $0x5c] sm:$0xf]
      %v645 = vld [vmem:[#allocation9 + $0x60] sm:$0xf]
      %v646 = vld [vmem:[#allocation9 + $0x64] sm:$0xf]
      %v647 = vld [vmem:[#allocation9 + $0x68] sm:$0xf]
      %v648 = vld [vmem:[#allocation9 + $0x6c] sm:$0xf]
      %v649 = vld [vmem:[#allocation9 + $0x70] sm:$0xf]
      %v650 = vld [vmem:[#allocation9 + $0x74] sm:$0xf]
      %v651 = vld [vmem:[#allocation9 + $0x78] sm:$0xf]
      %v652 = vld [vmem:[#allocation9 + $0x7c] sm:$0xf]
      %v653 = vld [vmem:[%s6] sm:$0x1]
      %v655 = vlaneseq
      %v656 = vshrl.u32 %v655, 7
      %v657 = vsub.s32 0, %v656
      %v658 = vrot.slane %v653, %v657
      %v692 = vunpack.c.l.b16 %v621
      %v693 = vunpack.c.l.b16 %v622
      %v694 = vunpack.c.l.b16 %v623
      %v695 = vunpack.c.l.b16 %v624
      %v696 = vunpack.c.l.b16 %v625
      %v697 = vunpack.c.l.b16 %v626
      %v698 = vunpack.c.l.b16 %v627
      %v699 = vunpack.c.l.b16 %v628
      %v700 = vunpack.c.l.b16 %v629
      %v701 = vunpack.c.l.b16 %v630
      %v702 = vunpack.c.l.b16 %v631
      %v703 = vunpack.c.l.b16 %v632
      %v704 = vunpack.c.l.b16 %v633
      %v705 = vunpack.c.l.b16 %v634
      %v706 = vunpack.c.l.b16 %v635
      %v707 = vunpack.c.l.b16 %v636
      %v708 = vunpack.c.l.b16 %v637
      %v709 = vunpack.c.l.b16 %v638
      %v710 = vunpack.c.l.b16 %v639
      %v711 = vunpack.c.l.b16 %v640
      %v712 = vunpack.c.l.b16 %v641
      %v713 = vunpack.c.l.b16 %v642
      %v714 = vunpack.c.l.b16 %v643
      %v715 = vunpack.c.l.b16 %v644
      %v716 = vunpack.c.l.b16 %v645
      %v717 = vunpack.c.l.b16 %v646
      %v718 = vunpack.c.l.b16 %v647
      %v719 = vunpack.c.l.b16 %v648
      %v720 = vunpack.c.l.b16 %v649
      %v721 = vunpack.c.l.b16 %v650
      %v722 = vunpack.c.l.b16 %v651
      %v723 = vunpack.c.l.b16 %v652
      %v724 = vpack.c.b16 %v693, %v692
      %v725 = vpack.c.b16 %v695, %v694
      %v726 = vpack.c.b16 %v697, %v696
      %v727 = vpack.c.b16 %v699, %v698
      %v728 = vpack.c.b16 %v701, %v700
      %v729 = vpack.c.b16 %v703, %v702
      %v730 = vpack.c.b16 %v705, %v704
      %v731 = vpack.c.b16 %v707, %v706
      %v732 = vpack.c.b16 %v709, %v708
      %v733 = vpack.c.b16 %v711, %v710
      %v734 = vpack.c.b16 %v713, %v712
      %v735 = vpack.c.b16 %v715, %v714
      %v736 = vpack.c.b16 %v717, %v716
      %v737 = vpack.c.b16 %v719, %v718
      %v738 = vpack.c.b16 %v721, %v720
      %v739 = vpack.c.b16 %v723, %v722
      %756 = vmatprep.subr.bf16.mxu0 0
      %757 = vmatpush1.bf16.msra.mxu0 %v731
      %758 = vmatprep.subr.bf16.mxu0 0
      %759 = vmatpush1.bf16.msra.mxu0 %v730
      %760 = vmatprep.subr.bf16.mxu0 0
      %761 = vmatpush1.bf16.msra.mxu0 %v729
      %762 = vmatprep.subr.bf16.mxu0 0
      %763 = vmatpush1.bf16.msra.mxu0 %v728
      %764 = vmatprep.subr.bf16.mxu0 0
      %765 = vmatpush1.bf16.msra.mxu0 %v727
      %766 = vmatprep.subr.bf16.mxu0 0
      %767 = vmatpush1.bf16.msra.mxu0 %v726
      %768 = vmatprep.subr.bf16.mxu0 0
      %769 = vmatpush1.bf16.msra.mxu0 %v725
      %770 = vmatprep.subr.bf16.mxu0 0
      %771 = vmatpush1.bf16.msra.mxu0 %v724
      %772 = vmatprep.subr.bf16.mxu0 0
      %773 = vmatpush2.bf16.msra.mxu0 %v739
      %774 = vmatprep.subr.bf16.mxu0 0
      %775 = vmatpush2.bf16.msra.mxu0 %v738
      %776 = vmatprep.subr.bf16.mxu0 0
      %777 = vmatpush2.bf16.msra.mxu0 %v737
      %778 = vmatprep.subr.bf16.mxu0 0
      %779 = vmatpush2.bf16.msra.mxu0 %v736
      %780 = vmatprep.subr.bf16.mxu0 0
      %781 = vmatpush2.bf16.msra.mxu0 %v735
      %782 = vmatprep.subr.bf16.mxu0 0
      %783 = vmatpush2.bf16.msra.mxu0 %v734
      %784 = vmatprep.subr.bf16.mxu0 0
      %785 = vmatpush2.bf16.msra.mxu0 %v733
      %786 = vmatprep.subr.bf16.mxu0 0
      %787 = vmatpush2.bf16.msra.mxu0 %v732
      %788 = vmatprep.mubr.bf16.mxu0 %v618
      %789 = vmatmul.mubr.bf16.gmra.mxu0 %v617
      %v790 = vpop.f32.mrf.mxu0
      %v791 = vadd.f32 %v658, %v790
      %v792 = vpop.f32.mrf.mxu0
      %v793 = vpop.f32.mrf.mxu0
      %v794 = vadd.f32 %v658, %v793
      %v795 = vpop.f32.mrf.mxu0
      %796 = vmatprep.mubr.bf16.mxu0 %v620
      %797 = vmatmul.mubr.bf16.gmra.mxu0 %v619
      %v798 = vpop.f32.mrf.mxu0
      %v799 = vadd.f32 %v658, %v798
      %v800 = vpop.f32.mrf.mxu0
      %v801 = vpop.f32.mrf.mxu0
      %v802 = vpop.f32.mrf.mxu0
      %803 = vdwg.mxu0
      %804 = vst [vmem:[#allocation11] sm:$0xff] %v791
      %805 = vst [vmem:[#allocation11 + $0x8] sm:$0xff] %v794
      %806 = vst [vmem:[#allocation11 + $0x10] sm:$0xff] %v799
    $region53: #{tpu_custom_call.1} parent=1 // pred_fallthru
      _
    // Predicated region
    $region54: #{tpu_custom_call.1} parent=1 // pred_check
      _
    $region55: #{tpu_custom_call.1} parent=1 // pred_check_branch
      %808 = sbr.rel (0) target = $region57
    $region56: #{tpu_custom_call.1} parent=1 // pred_region
      %s810 = ssub.s32 384, 384
      %811 = vsyncadd [#allocation5], %s810
      %s812 = sshll.u32 [#allocation11], 4
      %s813 = int_to_ptr.vmem [resolvable:$true] %s812
      %818 = dma.vmem_to_hbm [thread:$0]  %s813, 384, %s7, [#allocation5], 128, 128, 8
    $region57: #{tpu_custom_call.1} parent=1 // pred_fallthru
      _
    // Predicated region
    $region58: #{tpu_custom_call.1} parent=1 // pred_check
      _
    $region59: #{tpu_custom_call.1} parent=1 // pred_check_branch
      %820 = sbr.rel (0) target = $region61
    $region60: #{tpu_custom_call.1} parent=1 // pred_region
      %821 = dma.done [#allocation5], 384
    $region61: #{tpu_custom_call.1} parent=1 // pred_fallthru
      _
    %822 = vsyncpa [#allocation4], 1
    %823 = vsyncpa [#allocation7], 1
    %824 = vsyncpa [#allocation10], 1
    %825 = vsyncpa [#allocation5], 1

</llo_original>
